<compile_context>
chip_gen: v6e
topology: v6e:2x2x1
jax: 0.10.0
libtpu: 0.0.40
codegen_flags: <defaults>
</compile_context>

<pallas_src>
import math
import numpy as np

import jax
import jax.numpy as jnp
from jax.experimental import pallas as pl
from jax.experimental.pallas import tpu as pltpu

DIM = 32        # FeedForward(dim=32)
HID = 2048      # default hidden_dim
TM_MAX = 1024   # token rows per grid step (fits v5e/v6e/v7x VMEM with headroom)


def _round_up(x, m):
    return ((x + m - 1) // m) * m


# ----------------------------- Pallas kernel -----------------------------

def ffn_kernel(x_ref, w1_ref, b1_ref, w2_ref, b2_ref, o_ref):
    # x_ref : (TM, D) f32   (one token tile)
    # w1_ref: (D, H)  bf16, b1_ref: (1, H) f32   (VMEM-resident)
    # w2_ref: (H, D)  bf16, b2_ref: (1, D) f32   (VMEM-resident)
    x = x_ref[...].astype(jnp.bfloat16)

    # linear_1: bf16 operands, f32 accumulation on the MXU
    h = jnp.dot(x, w1_ref[...], preferred_element_type=jnp.float32) + b1_ref[...]

    # ReLU fused with the bf16 downcast -> the f32 (TM, H) tensor dies here.
    # Dropout: identity (eval / inference mode).
    h = jnp.maximum(h, 0.0).astype(jnp.bfloat16)

    # linear_2: bf16 operands, f32 accumulation on the MXU
    o = jnp.dot(h, w2_ref[...], preferred_element_type=jnp.float32) + b2_ref[...]
    o_ref[...] = o


# ----------------------------- wrapper -----------------------------

def feed_forward(x, params):
    """FeedForward.forward (eval semantics). x: (B, S, D) f32 -> (B, S, D) f32."""
    B, S, D = x.shape
    N = B * S
    x2 = x.reshape(N, D)                        # fold batch into the row dim

    w1 = params["w1"].astype(jnp.bfloat16)      # (D, H)
    w2 = params["w2"].astype(jnp.bfloat16)      # (H, D)
    b1 = params["b1"]                           # (1, H) f32
    b2 = params["b2"]                           # (1, D) f32
    H = w1.shape[1]

    # Token-tile size: multiple of 8 (sublane), capped so the f32 (TM, H)
    # hidden intermediate stays ~8 MiB per grid step.
    tm = min(TM_MAX, _round_up(N, 8))
    n_pad = _round_up(N, tm)
    if n_pad != N:
        x2 = jnp.pad(x2, ((0, n_pad - N), (0, 0)))
    grid = (n_pad // tm,)

    flops = 4 * n_pad * D * H                    # two matmuls
    bytes_accessed = (n_pad * D * 4              # x in
                      + w1.size * 2 + b1.size * 4
                      + w2.size * 2 + b2.size * 4
                      + n_pad * D * 4)           # out

    out = pl.pallas_call(
        ffn_kernel,
        out_shape=jax.ShapeDtypeStruct((n_pad, D), jnp.float32),
        grid=grid,
        in_specs=[
            pl.BlockSpec((tm, D), lambda i: (i, 0)),   # x: tiled over tokens
            pl.BlockSpec((D, H), lambda i: (0, 0)),    # w1: resident
            pl.BlockSpec((1, H), lambda i: (0, 0)),    # b1: resident
            pl.BlockSpec((H, D), lambda i: (0, 0)),    # w2: resident
            pl.BlockSpec((1, D), lambda i: (0, 0)),    # b2: resident
        ],
        out_specs=pl.BlockSpec((tm, D), lambda i: (i, 0)),
        cost_estimate=pl.CostEstimate(flops=flops, transcendentals=0,
                                      bytes_accessed=bytes_accessed),
        compiler_params=pltpu.CompilerParams(
            dimension_semantics=("parallel",),         # megacore split on v7x
            vmem_limit_bytes=48 * 1024 * 1024),
    )(x2, w1, b1, w2, b2)

    if n_pad != N:
        out = out[:N]
    return out.reshape(B, S, D)


# ----------------------------- parameters -----------------------------

def init_params(key):
    """nn.Linear default init: U(-1/sqrt(fan_in), 1/sqrt(fan_in)) for W and b."""
    k1, k2, k3, k4 = jax.random.split(key, 4)
    lim1 = 1.0 / math.sqrt(DIM)
    lim2 = 1.0 / math.sqrt(HID)
    return dict(
        w1=jax.random.uniform(k1, (DIM, HID), jnp.float32, -lim1, lim1),
        b1=jax.random.uniform(k2, (1, HID), jnp.float32, -lim1, lim1),
        w2=jax.random.uniform(k3, (HID, DIM), jnp.float32, -lim2, lim2),
        b2=jax.random.uniform(k4, (1, DIM), jnp.float32, -lim2, lim2),
    )


# ----------------------------- pure-JAX reference -----------------------------

def reference_forward(x, params):
    h = jnp.maximum(x @ params["w1"] + params["b1"], 0.0)
    # dropout: identity (eval mode)
    return h @ params["w2"] + params["b2"]


# ----------------------------- main -----------------------------

if __name__ == "__main__":
    key = jax.random.PRNGKey(0)
    kp, kx = jax.random.split(key)
    params = init_params(kp)

    B, S = 2, 8
    x = jax.random.normal(kx, (B, S, DIM), jnp.float32)

    out = jax.block_until_ready(feed_forward(x, params))
    assert out.shape == (B, S, DIM)

    ref = reference_forward(x, params)
    # bf16 matmul operands with f32 accumulation -> slightly looser tolerance
    # than a pure-f32 path.
    np.testing.assert_allclose(np.asarray(out), np.asarray(ref),
                               rtol=2e-2, atol=2e-2)

    # Also exercise a multi-tile / padded case to cover the grid path.
    B2, S2 = 4, 300                      # N = 1200 -> TM=1024, padded to 2048
    x2 = jax.random.normal(jax.random.PRNGKey(1), (B2, S2, DIM), jnp.float32)
    out2 = jax.block_until_ready(feed_forward(x2, params))
    ref2 = reference_forward(x2, params)
    np.testing.assert_allclose(np.asarray(out2), np.asarray(ref2),
                               rtol=2e-2, atol=2e-2)

    print("KERNEL_OK")
</pallas_src>

<mosaic_0001>
module attributes {stable_mosaic.version = 11 : i64} {
  func.func @ffn_kernel(%arg0: i32, %arg1: memref<16x32xf32, #tpu.memory_space<vmem>>, %arg2: memref<32x2048xbf16, #tpu.memory_space<vmem>>, %arg3: memref<1x2048xf32, #tpu.memory_space<vmem>>, %arg4: memref<2048x32xbf16, #tpu.memory_space<vmem>>, %arg5: memref<1x32xf32, #tpu.memory_space<vmem>>, %arg6: memref<16x32xf32, #tpu.memory_space<vmem>>) attributes {dimension_semantics = [#tpu.dimension_semantics<parallel>], iteration_bounds = array<i64: 1>, scalar_prefetch = 0 : i64, scratch_operands = 0 : i64, tpu.core_type = #tpu.core_type<tc>, window_params = [{transform_indices = @transform_0, window_bounds = array<i64: 16, 32>}, {pipeline_mode = #tpu.pipeline_mode<synchronous>, transform_indices = @transform_1, window_bounds = array<i64: 32, 2048>}, {pipeline_mode = #tpu.pipeline_mode<synchronous>, transform_indices = @transform_2, window_bounds = array<i64: 1, 2048>}, {pipeline_mode = #tpu.pipeline_mode<synchronous>, transform_indices = @transform_3, window_bounds = array<i64: 2048, 32>}, {pipeline_mode = #tpu.pipeline_mode<synchronous>, transform_indices = @transform_4, window_bounds = array<i64: 1, 32>}, {transform_indices = @transform_5, window_bounds = array<i64: 16, 32>}]} {
    %c0 = arith.constant 0 : index
    %c0_0 = arith.constant 0 : index
    %0 = vector.load %arg1[%c0, %c0_0] : memref<16x32xf32, #tpu.memory_space<vmem>>, vector<16x32xf32>
    %1 = arith.truncf %0 : vector<16x32xf32> to vector<16x32xbf16>
    %c0_1 = arith.constant 0 : index
    %c0_2 = arith.constant 0 : index
    %2 = vector.load %arg2[%c0_1, %c0_2] : memref<32x2048xbf16, #tpu.memory_space<vmem>>, vector<32x2048xbf16>
    %cst = arith.constant dense<0.000000e+00> : vector<16x2048xf32>
    %3 = tpu.matmul %1, %2, %cst {dimension_numbers = #tpu.dot_dimension_numbers<[1], [0], [0], [1], [0, 0, 1, 1], [], []>} : vector<16x32xbf16>, vector<32x2048xbf16>, vector<16x2048xf32> -> vector<16x2048xf32>
    %c0_3 = arith.constant 0 : index
    %c0_4 = arith.constant 0 : index
    %4 = vector.load %arg3[%c0_3, %c0_4] : memref<1x2048xf32, #tpu.memory_space<vmem>>, vector<1x2048xf32>
    %5 = vector.broadcast %4 : vector<1x2048xf32> to vector<16x2048xf32>
    %6 = arith.addf %3, %5 : vector<16x2048xf32>
    %cst_5 = arith.constant 0.000000e+00 : f32
    %7 = vector.broadcast %cst_5 : f32 to vector<16x2048xf32>
    %8 = arith.maximumf %6, %7 : vector<16x2048xf32>
    %9 = arith.truncf %8 : vector<16x2048xf32> to vector<16x2048xbf16>
    %c0_6 = arith.constant 0 : index
    %c0_7 = arith.constant 0 : index
    %10 = vector.load %arg4[%c0_6, %c0_7] : memref<2048x32xbf16, #tpu.memory_space<vmem>>, vector<2048x32xbf16>
    %cst_8 = arith.constant dense<0.000000e+00> : vector<16x32xf32>
    %11 = tpu.matmul %9, %10, %cst_8 {dimension_numbers = #tpu.dot_dimension_numbers<[1], [0], [0], [1], [0, 0, 1, 1], [], []>} : vector<16x2048xbf16>, vector<2048x32xbf16>, vector<16x32xf32> -> vector<16x32xf32>
    %c0_9 = arith.constant 0 : index
    %c0_10 = arith.constant 0 : index
    %12 = vector.load %arg5[%c0_9, %c0_10] : memref<1x32xf32, #tpu.memory_space<vmem>>, vector<1x32xf32>
    %13 = vector.broadcast %12 : vector<1x32xf32> to vector<16x32xf32>
    %14 = arith.addf %11, %13 : vector<16x32xf32>
    %c0_11 = arith.constant 0 : index
    %c0_12 = arith.constant 0 : index
    %15 = vector.load %arg6[%c0_11, %c0_12] : memref<16x32xf32, #tpu.memory_space<vmem>>, vector<16x32xf32>
    tpu.vector_store %arg6[%c0_11, %c0_12], %14 {strides = array<i32>} : memref<16x32xf32, #tpu.memory_space<vmem>>, vector<16x32xf32>,
    return
  }
  func.func @transform_0(%arg0: i32) -> (i32, i32) {
    %c0_i32 = arith.constant 0 : i32
    %c0_i32_0 = arith.constant 0 : i32
    return %arg0, %c0_i32 : i32, i32
  }
  func.func @transform_1(%arg0: i32) -> (i32, i32) {
    %c0_i32 = arith.constant 0 : i32
    %c0_i32_0 = arith.constant 0 : i32
    %c0_i32_1 = arith.constant 0 : i32
    return %c0_i32, %c0_i32_0 : i32, i32
  }
  func.func @transform_2(%arg0: i32) -> (i32, i32) {
    %c0_i32 = arith.constant 0 : i32
    %c0_i32_0 = arith.constant 0 : i32
    %c0_i32_1 = arith.constant 0 : i32
    return %c0_i32, %c0_i32_0 : i32, i32
  }
  func.func @transform_3(%arg0: i32) -> (i32, i32) {
    %c0_i32 = arith.constant 0 : i32
    %c0_i32_0 = arith.constant 0 : i32
    %c0_i32_1 = arith.constant 0 : i32
    return %c0_i32, %c0_i32_0 : i32, i32
  }
  func.func @transform_4(%arg0: i32) -> (i32, i32) {
    %c0_i32 = arith.constant 0 : i32
    %c0_i32_0 = arith.constant 0 : i32
    %c0_i32_1 = arith.constant 0 : i32
    return %c0_i32, %c0_i32_0 : i32, i32
  }
  func.func @transform_5(%arg0: i32) -> (i32, i32) {
    %c0_i32 = arith.constant 0 : i32
    %c0_i32_0 = arith.constant 0 : i32
    return %arg0, %c0_i32 : i32, i32
  }
}

</mosaic_0001>

<llo_original>
// kernel: tpu_custom_call.1
$region0: #{tpu_custom_call.1}
  #allocation0 [shape = 'u32[]', space=smem, size = 0x4, offset = 0x4, fixed_abs, tag = 'smem constant byte address 0x4 - core index']
  #allocation1 [shape = 'u32[144,128]{1,0:T(1,128)}', space=vmem, size = 0x12000, scoped, tag = 'internal scratch']
  %s0 = inlined_call_operand.vmem [shape: f32[16,32], index: 0, kind: input, shape index: {}]
  %s1 = inlined_call_operand.vmem [shape: bf16[32,2048], index: 1, kind: input, shape index: {}]
  %s2 = inlined_call_operand.vmem [shape: f32[1,2048], index: 2, kind: input, shape index: {}]
  %s3 = inlined_call_operand.vmem [shape: bf16[2048,32], index: 3, kind: input, shape index: {}]
  %s4 = inlined_call_operand.vmem [shape: f32[1,32], index: 4, kind: input, shape index: {}]
  %s5 = inlined_call_operand.hbm [shape: f32[16,32], index: 5, kind: output, shape index: {}]
  %s6 = sld [smem:[#allocation0]]
  $region30: #{tpu_custom_call.1} parent=0
    _
  %s8 = ssub.s32 1, %s6
  %s9 = scalar_select 0, %s8, %s6
  $region1: #{tpu_custom_call.1} parent=0
    #allocation2 [shape = 'u8[8192]{0}', space=vmem, size = 0x2000, scoped, tag = 'output window, operand 0, single buffered']
    #allocation3 [shape = 's32[1]{0}', space=sflag, size = 0x4, scoped, tag = 'scoped memory for tpu_custom_call.1']
    %10 = vsyncpa [#allocation3], 0
    // Predicated region
    $region2: #{tpu_custom_call.1} parent=1 // pred_check
      _
    $region3: #{tpu_custom_call.1} parent=1 // pred_check_branch
      %12 = sbr.rel (0) target = $region5
    $region4: #{tpu_custom_call.1} parent=1 // pred_region
      _
    $region5: #{tpu_custom_call.1} parent=1 // pred_fallthru
      _
    // Predicated region
    $region6: #{tpu_custom_call.1} parent=1 // pred_check
      _
    $region7: #{tpu_custom_call.1} parent=1 // pred_check_branch
      %14 = sbr.rel (0) target = $region9
    $region8: #{tpu_custom_call.1} parent=1 // pred_region
      _
    $region9: #{tpu_custom_call.1} parent=1 // pred_fallthru
      _
    // Predicated region
    $region10: #{tpu_custom_call.1} parent=1 // pred_check
      _
    $region11: #{tpu_custom_call.1} parent=1 // pred_check_branch
      %16 = sbr.rel (0) target = $region13
    $region12: #{tpu_custom_call.1} parent=1 // pred_region
      _
    $region13: #{tpu_custom_call.1} parent=1 // pred_fallthru
      _
    // Predicated region
    $region14: #{tpu_custom_call.1} parent=1 // pred_check
      _
    $region15: #{tpu_custom_call.1} parent=1 // pred_check_branch
      %18 = sbr.rel (0) target = $region17
    $region16: #{tpu_custom_call.1} parent=1 // pred_region
      _
    $region17: #{tpu_custom_call.1} parent=1 // pred_fallthru
      _
    // Predicated region
    $region18: #{tpu_custom_call.1} parent=1 // pred_check
      _
    $region19: #{tpu_custom_call.1} parent=1 // pred_check_branch
      %20 = sbr.rel (0) target = $region21
    $region20: #{tpu_custom_call.1} parent=1 // pred_region
      _
    $region21: #{tpu_custom_call.1} parent=1 // pred_fallthru
      _
    %v22 = vld [vmem:[%s0] sm:$0xff]
    %v23 = vld [vmem:[%s0 + $0x8] sm:$0xff]
    %v24 = vpack.c.bf16 %v23, %v22
    %v25 = vld [vmem:[%s1] sm:$0xff]
    %v26 = vld [vmem:[%s1 + $0x8] sm:$0xff]
    %v27 = vld [vmem:[%s1 + $0x10] sm:$0xff]
    %v28 = vld [vmem:[%s1 + $0x18] sm:$0xff]
    %v29 = vld [vmem:[%s1 + $0x20] sm:$0xff]
    %v30 = vld [vmem:[%s1 + $0x28] sm:$0xff]
    %v31 = vld [vmem:[%s1 + $0x30] sm:$0xff]
    %v32 = vld [vmem:[%s1 + $0x38] sm:$0xff]
    %v33 = vld [vmem:[%s1 + $0x40] sm:$0xff]
    %v34 = vld [vmem:[%s1 + $0x48] sm:$0xff]
    %v35 = vld [vmem:[%s1 + $0x50] sm:$0xff]
    %v36 = vld [vmem:[%s1 + $0x58] sm:$0xff]
    %v37 = vld [vmem:[%s1 + $0x60] sm:$0xff]
    %v38 = vld [vmem:[%s1 + $0x68] sm:$0xff]
    %v39 = vld [vmem:[%s1 + $0x70] sm:$0xff]
    %v40 = vld [vmem:[%s1 + $0x78] sm:$0xff]
    %v41 = vld [vmem:[%s1 + $0x80] sm:$0xff]
    %v42 = vld [vmem:[%s1 + $0x88] sm:$0xff]
    %v43 = vld [vmem:[%s1 + $0x90] sm:$0xff]
    %v44 = vld [vmem:[%s1 + $0x98] sm:$0xff]
    %v45 = vld [vmem:[%s1 + $0xa0] sm:$0xff]
    %v46 = vld [vmem:[%s1 + $0xa8] sm:$0xff]
    %v47 = vld [vmem:[%s1 + $0xb0] sm:$0xff]
    %v48 = vld [vmem:[%s1 + $0xb8] sm:$0xff]
    %v49 = vld [vmem:[%s1 + $0xc0] sm:$0xff]
    %v50 = vld [vmem:[%s1 + $0xc8] sm:$0xff]
    %v51 = vld [vmem:[%s1 + $0xd0] sm:$0xff]
    %v52 = vld [vmem:[%s1 + $0xd8] sm:$0xff]
    %v53 = vld [vmem:[%s1 + $0xe0] sm:$0xff]
    %v54 = vld [vmem:[%s1 + $0xe8] sm:$0xff]
    %v55 = vld [vmem:[%s1 + $0xf0] sm:$0xff]
    %v56 = vld [vmem:[%s1 + $0xf8] sm:$0xff]
    %v57 = vld [vmem:[%s2] sm:$0xff]
    %v58 = vld [vmem:[%s2 + $0x8] sm:$0xff]
    %v61 = vlaneseq
    %v62 = vshrl.u32 %v61, 7
    %v63 = vsub.s32 0, %v62
    %v64 = vrot.slane %v57, %v63
    %v65 = vlaneseq
    %v66 = vshrl.u32 %v65, 7
    %v67 = vsub.s32 1, %v66
    %v68 = vrot.slane %v57, %v67
    %v69 = vlaneseq
    %v70 = vshrl.u32 %v69, 7
    %v71 = vsub.s32 2, %v70
    %v72 = vrot.slane %v57, %v71
    %v73 = vlaneseq
    %v74 = vshrl.u32 %v73, 7
    %v75 = vsub.s32 3, %v74
    %v76 = vrot.slane %v57, %v75
    %v77 = vlaneseq
    %v78 = vshrl.u32 %v77, 7
    %v79 = vsub.s32 4, %v78
    %v80 = vrot.slane %v57, %v79
    %v81 = vlaneseq
    %v82 = vshrl.u32 %v81, 7
    %v83 = vsub.s32 5, %v82
    %v84 = vrot.slane %v57, %v83
    %v85 = vlaneseq
    %v86 = vshrl.u32 %v85, 7
    %v87 = vsub.s32 6, %v86
    %v88 = vrot.slane %v57, %v87
    %v89 = vlaneseq
    %v90 = vshrl.u32 %v89, 7
    %v91 = vsub.s32 7, %v90
    %v92 = vrot.slane %v57, %v91
    %v93 = vlaneseq
    %v94 = vshrl.u32 %v93, 7
    %v95 = vsub.s32 0, %v94
    %v96 = vrot.slane %v58, %v95
    %v97 = vlaneseq
    %v98 = vshrl.u32 %v97, 7
    %v99 = vsub.s32 1, %v98
    %v100 = vrot.slane %v58, %v99
    %v101 = vlaneseq
    %v102 = vshrl.u32 %v101, 7
    %v103 = vsub.s32 2, %v102
    %v104 = vrot.slane %v58, %v103
    %v105 = vlaneseq
    %v106 = vshrl.u32 %v105, 7
    %v107 = vsub.s32 3, %v106
    %v108 = vrot.slane %v58, %v107
    %v109 = vlaneseq
    %v110 = vshrl.u32 %v109, 7
    %v111 = vsub.s32 4, %v110
    %v112 = vrot.slane %v58, %v111
    %v113 = vlaneseq
    %v114 = vshrl.u32 %v113, 7
    %v115 = vsub.s32 5, %v114
    %v116 = vrot.slane %v58, %v115
    %v117 = vlaneseq
    %v118 = vshrl.u32 %v117, 7
    %v119 = vsub.s32 6, %v118
    %v120 = vrot.slane %v58, %v119
    %v121 = vlaneseq
    %v122 = vshrl.u32 %v121, 7
    %v123 = vsub.s32 7, %v122
    %v124 = vrot.slane %v58, %v123
    %v173 = vunpack.c.l.b16 %v25
    %v174 = vunpack.c.h.b16 %v25
    %v175 = vunpack.c.l.b16 %v26
    %v176 = vunpack.c.h.b16 %v26
    %v177 = vunpack.c.l.b16 %v27
    %v178 = vunpack.c.h.b16 %v27
    %v179 = vunpack.c.l.b16 %v28
    %v180 = vunpack.c.h.b16 %v28
    %v181 = vunpack.c.l.b16 %v29
    %v182 = vunpack.c.h.b16 %v29
    %v183 = vunpack.c.l.b16 %v30
    %v184 = vunpack.c.h.b16 %v30
    %v185 = vunpack.c.l.b16 %v31
    %v186 = vunpack.c.h.b16 %v31
    %v187 = vunpack.c.l.b16 %v32
    %v188 = vunpack.c.h.b16 %v32
    %v189 = vunpack.c.l.b16 %v33
    %v190 = vunpack.c.h.b16 %v33
    %v191 = vunpack.c.l.b16 %v34
    %v192 = vunpack.c.h.b16 %v34
    %v193 = vunpack.c.l.b16 %v35
    %v194 = vunpack.c.h.b16 %v35
    %v195 = vunpack.c.l.b16 %v36
    %v196 = vunpack.c.h.b16 %v36
    %v197 = vunpack.c.l.b16 %v37
    %v198 = vunpack.c.h.b16 %v37
    %v199 = vunpack.c.l.b16 %v38
    %v200 = vunpack.c.h.b16 %v38
    %v201 = vunpack.c.l.b16 %v39
    %v202 = vunpack.c.h.b16 %v39
    %v203 = vunpack.c.l.b16 %v40
    %v204 = vunpack.c.h.b16 %v40
    %v205 = vunpack.c.l.b16 %v41
    %v206 = vunpack.c.h.b16 %v41
    %v207 = vunpack.c.l.b16 %v42
    %v208 = vunpack.c.h.b16 %v42
    %v209 = vunpack.c.l.b16 %v43
    %v210 = vunpack.c.h.b16 %v43
    %v211 = vunpack.c.l.b16 %v44
    %v212 = vunpack.c.h.b16 %v44
    %v213 = vunpack.c.l.b16 %v45
    %v214 = vunpack.c.h.b16 %v45
    %v215 = vunpack.c.l.b16 %v46
    %v216 = vunpack.c.h.b16 %v46
    %v217 = vunpack.c.l.b16 %v47
    %v218 = vunpack.c.h.b16 %v47
    %v219 = vunpack.c.l.b16 %v48
    %v220 = vunpack.c.h.b16 %v48
    %v221 = vunpack.c.l.b16 %v49
    %v222 = vunpack.c.h.b16 %v49
    %v223 = vunpack.c.l.b16 %v50
    %v224 = vunpack.c.h.b16 %v50
    %v225 = vunpack.c.l.b16 %v51
    %v226 = vunpack.c.h.b16 %v51
    %v227 = vunpack.c.l.b16 %v52
    %v228 = vunpack.c.h.b16 %v52
    %v229 = vunpack.c.l.b16 %v53
    %v230 = vunpack.c.h.b16 %v53
    %v231 = vunpack.c.l.b16 %v54
    %v232 = vunpack.c.h.b16 %v54
    %v233 = vunpack.c.l.b16 %v55
    %v234 = vunpack.c.h.b16 %v55
    %v235 = vunpack.c.l.b16 %v56
    %v236 = vunpack.c.h.b16 %v56
    %v237 = vpack.c.b16 %v189, %v173
    %v238 = vpack.c.b16 %v190, %v174
    %v239 = vpack.c.b16 %v191, %v175
    %v240 = vpack.c.b16 %v192, %v176
    %v241 = vpack.c.b16 %v193, %v177
    %v242 = vpack.c.b16 %v194, %v178
    %v243 = vpack.c.b16 %v195, %v179
    %v244 = vpack.c.b16 %v196, %v180
    %v245 = vpack.c.b16 %v197, %v181
    %v246 = vpack.c.b16 %v198, %v182
    %v247 = vpack.c.b16 %v199, %v183
    %v248 = vpack.c.b16 %v200, %v184
    %v249 = vpack.c.b16 %v201, %v185
    %v250 = vpack.c.b16 %v202, %v186
    %v251 = vpack.c.b16 %v203, %v187
    %v252 = vpack.c.b16 %v204, %v188
    %v253 = vpack.c.b16 %v221, %v205
    %v254 = vpack.c.b16 %v222, %v206
    %v255 = vpack.c.b16 %v223, %v207
    %v256 = vpack.c.b16 %v224, %v208
    %v257 = vpack.c.b16 %v225, %v209
    %v258 = vpack.c.b16 %v226, %v210
    %v259 = vpack.c.b16 %v227, %v211
    %v260 = vpack.c.b16 %v228, %v212
    %v261 = vpack.c.b16 %v229, %v213
    %v262 = vpack.c.b16 %v230, %v214
    %v263 = vpack.c.b16 %v231, %v215
    %v264 = vpack.c.b16 %v232, %v216
    %v265 = vpack.c.b16 %v233, %v217
    %v266 = vpack.c.b16 %v234, %v218
    %v267 = vpack.c.b16 %v235, %v219
    %v268 = vpack.c.b16 %v236, %v220
    %vm301 = vcmask 261120
    %v303 = vsel %vm301, %v24, 0
    %305 = vmatprep.subr.bf16.mxu0 0
    %306 = vmatpush1.bf16.msra.mxu0 0
    %307 = vmatprep.subr.bf16.mxu0 0
    %308 = vmatpush1.bf16.msra.mxu0 0
    %309 = vmatprep.subr.bf16.mxu0 0
    %310 = vmatpush1.bf16.msra.mxu0 0
    %311 = vmatprep.subr.bf16.mxu0 0
    %312 = vmatpush1.bf16.msra.mxu0 0
    %313 = vmatprep.subr.bf16.mxu0 0
    %314 = vmatpush1.bf16.msra.mxu0 0
    %315 = vmatprep.subr.bf16.mxu0 0
    %316 = vmatpush1.bf16.msra.mxu0 0
    %317 = vmatprep.subr.bf16.mxu0 %v254
    %318 = vmatpush1.bf16.msra.mxu0 %v253
    %319 = vmatprep.subr.bf16.mxu0 %v238
    %320 = vmatpush1.bf16.msra.mxu0 %v237
    %321 = vmatprep.subr.bf16.mxu0 0
    %322 = vmatpush2.bf16.msra.mxu0 0
    %323 = vmatprep.subr.bf16.mxu0 0
    %324 = vmatpush2.bf16.msra.mxu0 0
    %325 = vmatprep.subr.bf16.mxu0 0
    %326 = vmatpush2.bf16.msra.mxu0 0
    %327 = vmatprep.subr.bf16.mxu0 0
    %328 = vmatpush2.bf16.msra.mxu0 0
    %329 = vmatprep.subr.bf16.mxu0 0
    %330 = vmatpush2.bf16.msra.mxu0 0
    %331 = vmatprep.subr.bf16.mxu0 0
    %332 = vmatpush2.bf16.msra.mxu0 0
    %333 = vmatprep.subr.bf16.mxu0 0
    %334 = vmatpush2.bf16.msra.mxu0 0
    %335 = vmatprep.subr.bf16.mxu0 0
    %336 = vmatpush2.bf16.msra.mxu0 0
    %337 = vmatprep.mubr.bf16.mxu0 0
    %338 = vmatmul.mubr.bf16.gmra.mxu0 %v303
    %v339 = vpop.f32.mrf.mxu0
    %v340 = vadd.f32 %v64, %v339
    %v341 = vpop.f32.mrf.mxu0
    %v342 = vadd.f32 %v68, %v341
    %v343 = vpop.f32.mrf.mxu0
    %v344 = vadd.f32 %v64, %v343
    %v345 = vpop.f32.mrf.mxu0
    %v346 = vadd.f32 %v68, %v345
    %347 = vdwg.mxu0
    %348 = vmatprep.subr.bf16.mxu0 0
    %349 = vmatpush1.bf16.msra.mxu0 0
    %350 = vmatprep.subr.bf16.mxu0 0
    %351 = vmatpush1.bf16.msra.mxu0 0
    %352 = vmatprep.subr.bf16.mxu0 0
    %353 = vmatpush1.bf16.msra.mxu0 0
    %354 = vmatprep.subr.bf16.mxu0 0
    %355 = vmatpush1.bf16.msra.mxu0 0
    %356 = vmatprep.subr.bf16.mxu0 0
    %357 = vmatpush1.bf16.msra.mxu0 0
    %358 = vmatprep.subr.bf16.mxu0 0
    %359 = vmatpush1.bf16.msra.mxu0 0
    %360 = vmatprep.subr.bf16.mxu0 %v256
    %361 = vmatpush1.bf16.msra.mxu0 %v255
    %362 = vmatprep.subr.bf16.mxu0 %v240
    %363 = vmatpush1.bf16.msra.mxu0 %v239
    %364 = vmatprep.subr.bf16.mxu0 0
    %365 = vmatpush2.bf16.msra.mxu0 0
    %366 = vmatprep.subr.bf16.mxu0 0
    %367 = vmatpush2.bf16.msra.mxu0 0
    %368 = vmatprep.subr.bf16.mxu0 0
    %369 = vmatpush2.bf16.msra.mxu0 0
    %370 = vmatprep.subr.bf16.mxu0 0
    %371 = vmatpush2.bf16.msra.mxu0 0
    %372 = vmatprep.subr.bf16.mxu0 0
    %373 = vmatpush2.bf16.msra.mxu0 0
    %374 = vmatprep.subr.bf16.mxu0 0
    %375 = vmatpush2.bf16.msra.mxu0 0
    %376 = vmatprep.subr.bf16.mxu0 0
    %377 = vmatpush2.bf16.msra.mxu0 0
    %378 = vmatprep.subr.bf16.mxu0 0
    %379 = vmatpush2.bf16.msra.mxu0 0
    %380 = vmatprep.mubr.bf16.mxu0 0
    %381 = vmatmul.mubr.bf16.gmra.mxu0 %v303
    %v382 = vpop.f32.mrf.mxu0
    %v383 = vadd.f32 %v72, %v382
    %v384 = vpop.f32.mrf.mxu0
    %v385 = vadd.f32 %v76, %v384
    %v386 = vpop.f32.mrf.mxu0
    %v387 = vadd.f32 %v72, %v386
    %v388 = vpop.f32.mrf.mxu0
    %v389 = vadd.f32 %v76, %v388
    %390 = vdwg.mxu0
    %391 = vmatprep.subr.bf16.mxu0 0
    %392 = vmatpush1.bf16.msra.mxu0 0
    %393 = vmatprep.subr.bf16.mxu0 0
    %394 = vmatpush1.bf16.msra.mxu0 0
    %395 = vmatprep.subr.bf16.mxu0 0
    %396 = vmatpush1.bf16.msra.mxu0 0
    %397 = vmatprep.subr.bf16.mxu0 0
    %398 = vmatpush1.bf16.msra.mxu0 0
    %399 = vmatprep.subr.bf16.mxu0 0
    %400 = vmatpush1.bf16.msra.mxu0 0
    %401 = vmatprep.subr.bf16.mxu0 0
    %402 = vmatpush1.bf16.msra.mxu0 0
    %403 = vmatprep.subr.bf16.mxu0 %v258
    %404 = vmatpush1.bf16.msra.mxu0 %v257
    %405 = vmatprep.subr.bf16.mxu0 %v242
    %406 = vmatpush1.bf16.msra.mxu0 %v241
    %407 = vmatprep.subr.bf16.mxu0 0
    %408 = vmatpush2.bf16.msra.mxu0 0
    %409 = vmatprep.subr.bf16.mxu0 0
    %410 = vmatpush2.bf16.msra.mxu0 0
    %411 = vmatprep.subr.bf16.mxu0 0
    %412 = vmatpush2.bf16.msra.mxu0 0
    %413 = vmatprep.subr.bf16.mxu0 0
    %414 = vmatpush2.bf16.msra.mxu0 0
    %415 = vmatprep.subr.bf16.mxu0 0
    %416 = vmatpush2.bf16.msra.mxu0 0
    %417 = vmatprep.subr.bf16.mxu0 0
    %418 = vmatpush2.bf16.msra.mxu0 0
    %419 = vmatprep.subr.bf16.mxu0 0
    %420 = vmatpush2.bf16.msra.mxu0 0
    %421 = vmatprep.subr.bf16.mxu0 0
    %422 = vmatpush2.bf16.msra.mxu0 0
    %423 = vmatprep.mubr.bf16.mxu0 0
    %424 = vmatmul.mubr.bf16.gmra.mxu0 %v303
    %v425 = vpop.f32.mrf.mxu0
    %v426 = vadd.f32 %v80, %v425
    %v427 = vpop.f32.mrf.mxu0
    %v428 = vadd.f32 %v84, %v427
    %v429 = vpop.f32.mrf.mxu0
    %v430 = vadd.f32 %v80, %v429
    %v431 = vpop.f32.mrf.mxu0
    %v432 = vadd.f32 %v84, %v431
    %433 = vdwg.mxu0
    %434 = vmatprep.subr.bf16.mxu0 0
    %435 = vmatpush1.bf16.msra.mxu0 0
    %436 = vmatprep.subr.bf16.mxu0 0
    %437 = vmatpush1.bf16.msra.mxu0 0
    %438 = vmatprep.subr.bf16.mxu0 0
    %439 = vmatpush1.bf16.msra.mxu0 0
    %440 = vmatprep.subr.bf16.mxu0 0
    %441 = vmatpush1.bf16.msra.mxu0 0
    %442 = vmatprep.subr.bf16.mxu0 0
    %443 = vmatpush1.bf16.msra.mxu0 0
    %444 = vmatprep.subr.bf16.mxu0 0
    %445 = vmatpush1.bf16.msra.mxu0 0
    %446 = vmatprep.subr.bf16.mxu0 %v260
    %447 = vmatpush1.bf16.msra.mxu0 %v259
    %448 = vmatprep.subr.bf16.mxu0 %v244
    %449 = vmatpush1.bf16.msra.mxu0 %v243
    %450 = vmatprep.subr.bf16.mxu0 0
    %451 = vmatpush2.bf16.msra.mxu0 0
    %452 = vmatprep.subr.bf16.mxu0 0
    %453 = vmatpush2.bf16.msra.mxu0 0
    %454 = vmatprep.subr.bf16.mxu0 0
    %455 = vmatpush2.bf16.msra.mxu0 0
    %456 = vmatprep.subr.bf16.mxu0 0
    %457 = vmatpush2.bf16.msra.mxu0 0
    %458 = vmatprep.subr.bf16.mxu0 0
    %459 = vmatpush2.bf16.msra.mxu0 0
    %460 = vmatprep.subr.bf16.mxu0 0
    %461 = vmatpush2.bf16.msra.mxu0 0
    %462 = vmatprep.subr.bf16.mxu0 0
    %463 = vmatpush2.bf16.msra.mxu0 0
    %464 = vmatprep.subr.bf16.mxu0 0
    %465 = vmatpush2.bf16.msra.mxu0 0
    %466 = vmatprep.mubr.bf16.mxu0 0
    %467 = vmatmul.mubr.bf16.gmra.mxu0 %v303
    %v468 = vpop.f32.mrf.mxu0
    %v469 = vadd.f32 %v88, %v468
    %v470 = vpop.f32.mrf.mxu0
    %v471 = vadd.f32 %v92, %v470
    %v472 = vpop.f32.mrf.mxu0
    %v473 = vadd.f32 %v88, %v472
    %v474 = vpop.f32.mrf.mxu0
    %v475 = vadd.f32 %v92, %v474
    %476 = vdwg.mxu0
    %477 = vmatprep.subr.bf16.mxu0 0
    %478 = vmatpush1.bf16.msra.mxu0 0
    %479 = vmatprep.subr.bf16.mxu0 0
    %480 = vmatpush1.bf16.msra.mxu0 0
    %481 = vmatprep.subr.bf16.mxu0 0
    %482 = vmatpush1.bf16.msra.mxu0 0
    %483 = vmatprep.subr.bf16.mxu0 0
    %484 = vmatpush1.bf16.msra.mxu0 0
    %485 = vmatprep.subr.bf16.mxu0 0
    %486 = vmatpush1.bf16.msra.mxu0 0
    %487 = vmatprep.subr.bf16.mxu0 0
    %488 = vmatpush1.bf16.msra.mxu0 0
    %489 = vmatprep.subr.bf16.mxu0 %v262
    %490 = vmatpush1.bf16.msra.mxu0 %v261
    %491 = vmatprep.subr.bf16.mxu0 %v246
    %492 = vmatpush1.bf16.msra.mxu0 %v245
    %493 = vmatprep.subr.bf16.mxu0 0
    %494 = vmatpush2.bf16.msra.mxu0 0
    %495 = vmatprep.subr.bf16.mxu0 0
    %496 = vmatpush2.bf16.msra.mxu0 0
    %497 = vmatprep.subr.bf16.mxu0 0
    %498 = vmatpush2.bf16.msra.mxu0 0
    %499 = vmatprep.subr.bf16.mxu0 0
    %500 = vmatpush2.bf16.msra.mxu0 0
    %501 = vmatprep.subr.bf16.mxu0 0
    %502 = vmatpush2.bf16.msra.mxu0 0
    %503 = vmatprep.subr.bf16.mxu0 0
    %504 = vmatpush2.bf16.msra.mxu0 0
    %505 = vmatprep.subr.bf16.mxu0 0
    %506 = vmatpush2.bf16.msra.mxu0 0
    %507 = vmatprep.subr.bf16.mxu0 0
    %508 = vmatpush2.bf16.msra.mxu0 0
    %509 = vmatprep.mubr.bf16.mxu0 0
    %510 = vmatmul.mubr.bf16.gmra.mxu0 %v303
    %v511 = vpop.f32.mrf.mxu0
    %v512 = vadd.f32 %v96, %v511
    %v513 = vpop.f32.mrf.mxu0
    %v514 = vadd.f32 %v100, %v513
    %v515 = vpop.f32.mrf.mxu0
    %v516 = vadd.f32 %v96, %v515
    %v517 = vpop.f32.mrf.mxu0
    %v518 = vadd.f32 %v100, %v517
    %519 = vdwg.mxu0
    %520 = vmatprep.subr.bf16.mxu0 0
    %521 = vmatpush1.bf16.msra.mxu0 0
    %522 = vmatprep.subr.bf16.mxu0 0
    %523 = vmatpush1.bf16.msra.mxu0 0
    %524 = vmatprep.subr.bf16.mxu0 0
    %525 = vmatpush1.bf16.msra.mxu0 0
    %526 = vmatprep.subr.bf16.mxu0 0
    %527 = vmatpush1.bf16.msra.mxu0 0
    %528 = vmatprep.subr.bf16.mxu0 0
    %529 = vmatpush1.bf16.msra.mxu0 0
    %530 = vmatprep.subr.bf16.mxu0 0
    %531 = vmatpush1.bf16.msra.mxu0 0
    %532 = vmatprep.subr.bf16.mxu0 %v264
    %533 = vmatpush1.bf16.msra.mxu0 %v263
    %534 = vmatprep.subr.bf16.mxu0 %v248
    %535 = vmatpush1.bf16.msra.mxu0 %v247
    %536 = vmatprep.subr.bf16.mxu0 0
    %537 = vmatpush2.bf16.msra.mxu0 0
    %538 = vmatprep.subr.bf16.mxu0 0
    %539 = vmatpush2.bf16.msra.mxu0 0
    %540 = vmatprep.subr.bf16.mxu0 0
    %541 = vmatpush2.bf16.msra.mxu0 0
    %542 = vmatprep.subr.bf16.mxu0 0
    %543 = vmatpush2.bf16.msra.mxu0 0
    %544 = vmatprep.subr.bf16.mxu0 0
    %545 = vmatpush2.bf16.msra.mxu0 0
    %546 = vmatprep.subr.bf16.mxu0 0
    %547 = vmatpush2.bf16.msra.mxu0 0
    %548 = vmatprep.subr.bf16.mxu0 0
    %549 = vmatpush2.bf16.msra.mxu0 0
    %550 = vmatprep.subr.bf16.mxu0 0
    %551 = vmatpush2.bf16.msra.mxu0 0
    %552 = vmatprep.mubr.bf16.mxu0 0
    %553 = vmatmul.mubr.bf16.gmra.mxu0 %v303
    %v554 = vpop.f32.mrf.mxu0
    %v555 = vadd.f32 %v104, %v554
    %v556 = vpop.f32.mrf.mxu0
    %v557 = vadd.f32 %v108, %v556
    %v558 = vpop.f32.mrf.mxu0
    %v559 = vadd.f32 %v104, %v558
    %v560 = vpop.f32.mrf.mxu0
    %v561 = vadd.f32 %v108, %v560
    %562 = vdwg.mxu0
    %563 = vmatprep.subr.bf16.mxu0 0
    %564 = vmatpush1.bf16.msra.mxu0 0
    %565 = vmatprep.subr.bf16.mxu0 0
    %566 = vmatpush1.bf16.msra.mxu0 0
    %567 = vmatprep.subr.bf16.mxu0 0
    %568 = vmatpush1.bf16.msra.mxu0 0
    %569 = vmatprep.subr.bf16.mxu0 0
    %570 = vmatpush1.bf16.msra.mxu0 0
    %571 = vmatprep.subr.bf16.mxu0 0
    %572 = vmatpush1.bf16.msra.mxu0 0
    %573 = vmatprep.subr.bf16.mxu0 0
    %574 = vmatpush1.bf16.msra.mxu0 0
    %575 = vmatprep.subr.bf16.mxu0 %v266
    %576 = vmatpush1.bf16.msra.mxu0 %v265
    %577 = vmatprep.subr.bf16.mxu0 %v250
    %578 = vmatpush1.bf16.msra.mxu0 %v249
    %579 = vmatprep.subr.bf16.mxu0 0
    %580 = vmatpush2.bf16.msra.mxu0 0
    %581 = vmatprep.subr.bf16.mxu0 0
    %582 = vmatpush2.bf16.msra.mxu0 0
    %583 = vmatprep.subr.bf16.mxu0 0
    %584 = vmatpush2.bf16.msra.mxu0 0
    %585 = vmatprep.subr.bf16.mxu0 0
    %586 = vmatpush2.bf16.msra.mxu0 0
    %587 = vmatprep.subr.bf16.mxu0 0
    %588 = vmatpush2.bf16.msra.mxu0 0
    %589 = vmatprep.subr.bf16.mxu0 0
    %590 = vmatpush2.bf16.msra.mxu0 0
    %591 = vmatprep.subr.bf16.mxu0 0
    %592 = vmatpush2.bf16.msra.mxu0 0
    %593 = vmatprep.subr.bf16.mxu0 0
    %594 = vmatpush2.bf16.msra.mxu0 0
    %595 = vmatprep.mubr.bf16.mxu0 0
    %596 = vmatmul.mubr.bf16.gmra.mxu0 %v303
    %v597 = vpop.f32.mrf.mxu0
    %v598 = vadd.f32 %v112, %v597
    %v599 = vpop.f32.mrf.mxu0
    %v600 = vadd.f32 %v116, %v599
    %v601 = vpop.f32.mrf.mxu0
    %v602 = vadd.f32 %v112, %v601
    %v603 = vpop.f32.mrf.mxu0
    %v604 = vadd.f32 %v116, %v603
    %605 = vdwg.mxu0
    %606 = vmatprep.subr.bf16.mxu0 0
    %607 = vmatpush1.bf16.msra.mxu0 0
    %608 = vmatprep.subr.bf16.mxu0 0
    %609 = vmatpush1.bf16.msra.mxu0 0
    %610 = vmatprep.subr.bf16.mxu0 0
    %611 = vmatpush1.bf16.msra.mxu0 0
    %612 = vmatprep.subr.bf16.mxu0 0
    %613 = vmatpush1.bf16.msra.mxu0 0
    %614 = vmatprep.subr.bf16.mxu0 0
    %615 = vmatpush1.bf16.msra.mxu0 0
    %616 = vmatprep.subr.bf16.mxu0 0
    %617 = vmatpush1.bf16.msra.mxu0 0
    %618 = vmatprep.subr.bf16.mxu0 %v268
    %619 = vmatpush1.bf16.msra.mxu0 %v267
    %620 = vmatprep.subr.bf16.mxu0 %v252
    %621 = vmatpush1.bf16.msra.mxu0 %v251
    %622 = vmatprep.subr.bf16.mxu0 0
    %623 = vmatpush2.bf16.msra.mxu0 0
    %624 = vmatprep.subr.bf16.mxu0 0
    %625 = vmatpush2.bf16.msra.mxu0 0
    %626 = vmatprep.subr.bf16.mxu0 0
    %627 = vmatpush2.bf16.msra.mxu0 0
    %628 = vmatprep.subr.bf16.mxu0 0
    %629 = vmatpush2.bf16.msra.mxu0 0
    %630 = vmatprep.subr.bf16.mxu0 0
    %631 = vmatpush2.bf16.msra.mxu0 0
    %632 = vmatprep.subr.bf16.mxu0 0
    %633 = vmatpush2.bf16.msra.mxu0 0
    %634 = vmatprep.subr.bf16.mxu0 0
    %635 = vmatpush2.bf16.msra.mxu0 0
    %636 = vmatprep.subr.bf16.mxu0 0
    %637 = vmatpush2.bf16.msra.mxu0 0
    %638 = vmatprep.mubr.bf16.mxu0 0
    %639 = vmatmul.mubr.bf16.gmra.mxu0 %v303
    %v640 = vpop.f32.mrf.mxu0
    %v641 = vadd.f32 %v120, %v640
    %v642 = vpop.f32.mrf.mxu0
    %v643 = vadd.f32 %v124, %v642
    %v644 = vpop.f32.mrf.mxu0
    %v645 = vadd.f32 %v120, %v644
    %v646 = vpop.f32.mrf.mxu0
    %v647 = vadd.f32 %v124, %v646
    %648 = vdwg.mxu0
    %v649 = vmax.f32 %v340, 0.0
    %v650 = vmax.f32 %v342, 0.0
    %v651 = vmax.f32 %v383, 0.0
    %v652 = vmax.f32 %v385, 0.0
    %v653 = vmax.f32 %v426, 0.0
    %v654 = vmax.f32 %v428, 0.0
    %v655 = vmax.f32 %v469, 0.0
    %v656 = vmax.f32 %v471, 0.0
    %v657 = vmax.f32 %v512, 0.0
    %v658 = vmax.f32 %v514, 0.0
    %v659 = vmax.f32 %v555, 0.0
    %v660 = vmax.f32 %v557, 0.0
    %v661 = vmax.f32 %v598, 0.0
    %v662 = vmax.f32 %v600, 0.0
    %v663 = vmax.f32 %v641, 0.0
    %v664 = vmax.f32 %v643, 0.0
    %v665 = vmax.f32 %v344, 0.0
    %v666 = vmax.f32 %v346, 0.0
    %v667 = vmax.f32 %v387, 0.0
    %v668 = vmax.f32 %v389, 0.0
    %v669 = vmax.f32 %v430, 0.0
    %v670 = vmax.f32 %v432, 0.0
    %v671 = vmax.f32 %v473, 0.0
    %v672 = vmax.f32 %v475, 0.0
    %v673 = vmax.f32 %v516, 0.0
    %v674 = vmax.f32 %v518, 0.0
    %v675 = vmax.f32 %v559, 0.0
    %v676 = vmax.f32 %v561, 0.0
    %v677 = vmax.f32 %v602, 0.0
    %v678 = vmax.f32 %v604, 0.0
    %v679 = vmax.f32 %v645, 0.0
    %v680 = vmax.f32 %v647, 0.0
    %v681 = vpack.c.bf16 %v665, %v649
    %v682 = vpack.c.bf16 %v666, %v650
    %v683 = vpack.c.bf16 %v667, %v651
    %v684 = vpack.c.bf16 %v668, %v652
    %v685 = vpack.c.bf16 %v669, %v653
    %v686 = vpack.c.bf16 %v670, %v654
    %v687 = vpack.c.bf16 %v671, %v655
    %v688 = vpack.c.bf16 %v672, %v656
    %v689 = vpack.c.bf16 %v673, %v657
    %v690 = vpack.c.bf16 %v674, %v658
    %v691 = vpack.c.bf16 %v675, %v659
    %v692 = vpack.c.bf16 %v676, %v660
    %v693 = vpack.c.bf16 %v677, %v661
    %v694 = vpack.c.bf16 %v678, %v662
    %v695 = vpack.c.bf16 %v679, %v663
    %v696 = vpack.c.bf16 %v680, %v664
    %v697 = vld [vmem:[%s3] sm:$0xf]
    %v698 = vld [vmem:[%s3 + $0x4] sm:$0xf]
    %v699 = vld [vmem:[%s3 + $0x8] sm:$0xf]
    %v700 = vld [vmem:[%s3 + $0xc] sm:$0xf]
    %v701 = vld [vmem:[%s3 + $0x10] sm:$0xf]
    %v702 = vld [vmem:[%s3 + $0x14] sm:$0xf]
    %v703 = vld [vmem:[%s3 + $0x18] sm:$0xf]
    %v704 = vld [vmem:[%s3 + $0x1c] sm:$0xf]
    %v705 = vld [vmem:[%s3 + $0x20] sm:$0xf]
    %v706 = vld [vmem:[%s3 + $0x24] sm:$0xf]
    %v707 = vld [vmem:[%s3 + $0x28] sm:$0xf]
    %v708 = vld [vmem:[%s3 + $0x2c] sm:$0xf]
    %v709 = vld [vmem:[%s3 + $0x30] sm:$0xf]
    %v710 = vld [vmem:[%s3 + $0x34] sm:$0xf]
    %v711 = vld [vmem:[%s3 + $0x38] sm:$0xf]
    %v712 = vld [vmem:[%s3 + $0x3c] sm:$0xf]
    %v713 = vld [vmem:[%s3 + $0x40] sm:$0xf]
    %v714 = vld [vmem:[%s3 + $0x44] sm:$0xf]
    %v715 = vld [vmem:[%s3 + $0x48] sm:$0xf]
    %v716 = vld [vmem:[%s3 + $0x4c] sm:$0xf]
    %v717 = vld [vmem:[%s3 + $0x50] sm:$0xf]
    %v718 = vld [vmem:[%s3 + $0x54] sm:$0xf]
    %v719 = vld [vmem:[%s3 + $0x58] sm:$0xf]
    %v720 = vld [vmem:[%s3 + $0x5c] sm:$0xf]
    %v721 = vld [vmem:[%s3 + $0x60] sm:$0xf]
    %v722 = vld [vmem:[%s3 + $0x64] sm:$0xf]
    %v723 = vld [vmem:[%s3 + $0x68] sm:$0xf]
    %v724 = vld [vmem:[%s3 + $0x6c] sm:$0xf]
    %v725 = vld [vmem:[%s3 + $0x70] sm:$0xf]
    %v726 = vld [vmem:[%s3 + $0x74] sm:$0xf]
    %v727 = vld [vmem:[%s3 + $0x78] sm:$0xf]
    %v728 = vld [vmem:[%s3 + $0x7c] sm:$0xf]
    %v729 = vld [vmem:[%s3 + $0x80] sm:$0xf]
    %v730 = vld [vmem:[%s3 + $0x84] sm:$0xf]
    %v731 = vld [vmem:[%s3 + $0x88] sm:$0xf]
    %v732 = vld [vmem:[%s3 + $0x8c] sm:$0xf]
    %v733 = vld [vmem:[%s3 + $0x90] sm:$0xf]
    %v734 = vld [vmem:[%s3 + $0x94] sm:$0xf]
    %v735 = vld [vmem:[%s3 + $0x98] sm:$0xf]
    %v736 = vld [vmem:[%s3 + $0x9c] sm:$0xf]
    %v737 = vld [vmem:[%s3 + $0xa0] sm:$0xf]
    %v738 = vld [vmem:[%s3 + $0xa4] sm:$0xf]
    %v739 = vld [vmem:[%s3 + $0xa8] sm:$0xf]
    %v740 = vld [vmem:[%s3 + $0xac] sm:$0xf]
    %v741 = vld [vmem:[%s3 + $0xb0] sm:$0xf]
    %v742 = vld [vmem:[%s3 + $0xb4] sm:$0xf]
    %v743 = vld [vmem:[%s3 + $0xb8] sm:$0xf]
    %v744 = vld [vmem:[%s3 + $0xbc] sm:$0xf]
    %v745 = vld [vmem:[%s3 + $0xc0] sm:$0xf]
    %v746 = vld [vmem:[%s3 + $0xc4] sm:$0xf]
    %v747 = vld [vmem:[%s3 + $0xc8] sm:$0xf]
    %v748 = vld [vmem:[%s3 + $0xcc] sm:$0xf]
    %v749 = vld [vmem:[%s3 + $0xd0] sm:$0xf]
    %v750 = vld [vmem:[%s3 + $0xd4] sm:$0xf]
    %v751 = vld [vmem:[%s3 + $0xd8] sm:$0xf]
    %v752 = vld [vmem:[%s3 + $0xdc] sm:$0xf]
    %v753 = vld [vmem:[%s3 + $0xe0] sm:$0xf]
    %v754 = vld [vmem:[%s3 + $0xe4] sm:$0xf]
    %v755 = vld [vmem:[%s3 + $0xe8] sm:$0xf]
    %v756 = vld [vmem:[%s3 + $0xec] sm:$0xf]
    %v757 = vld [vmem:[%s3 + $0xf0] sm:$0xf]
    %v758 = vld [vmem:[%s3 + $0xf4] sm:$0xf]
    %v759 = vld [vmem:[%s3 + $0xf8] sm:$0xf]
    %v760 = vld [vmem:[%s3 + $0xfc] sm:$0xf]
    %v761 = vld [vmem:[%s3 + $0x100] sm:$0xf]
    %v762 = vld [vmem:[%s3 + $0x104] sm:$0xf]
    %v763 = vld [vmem:[%s3 + $0x108] sm:$0xf]
    %v764 = vld [vmem:[%s3 + $0x10c] sm:$0xf]
    %v765 = vld [vmem:[%s3 + $0x110] sm:$0xf]
    %v766 = vld [vmem:[%s3 + $0x114] sm:$0xf]
    %v767 = vld [vmem:[%s3 + $0x118] sm:$0xf]
    %v768 = vld [vmem:[%s3 + $0x11c] sm:$0xf]
    %v769 = vld [vmem:[%s3 + $0x120] sm:$0xf]
    %v770 = vld [vmem:[%s3 + $0x124] sm:$0xf]
    %v771 = vld [vmem:[%s3 + $0x128] sm:$0xf]
    %v772 = vld [vmem:[%s3 + $0x12c] sm:$0xf]
    %v773 = vld [vmem:[%s3 + $0x130] sm:$0xf]
    %v774 = vld [vmem:[%s3 + $0x134] sm:$0xf]
    %v775 = vld [vmem:[%s3 + $0x138] sm:$0xf]
    %v776 = vld [vmem:[%s3 + $0x13c] sm:$0xf]
    %v777 = vld [vmem:[%s3 + $0x140] sm:$0xf]
    %v778 = vld [vmem:[%s3 + $0x144] sm:$0xf]
    %v779 = vld [vmem:[%s3 + $0x148] sm:$0xf]
    %v780 = vld [vmem:[%s3 + $0x14c] sm:$0xf]
    %v781 = vld [vmem:[%s3 + $0x150] sm:$0xf]
    %v782 = vld [vmem:[%s3 + $0x154] sm:$0xf]
    %v783 = vld [vmem:[%s3 + $0x158] sm:$0xf]
    %v784 = vld [vmem:[%s3 + $0x15c] sm:$0xf]
    %v785 = vld [vmem:[%s3 + $0x160] sm:$0xf]
    %v786 = vld [vmem:[%s3 + $0x164] sm:$0xf]
    %v787 = vld [vmem:[%s3 + $0x168] sm:$0xf]
    %v788 = vld [vmem:[%s3 + $0x16c] sm:$0xf]
    %v789 = vld [vmem:[%s3 + $0x170] sm:$0xf]
    %v790 = vld [vmem:[%s3 + $0x174] sm:$0xf]
    %v791 = vld [vmem:[%s3 + $0x178] sm:$0xf]
    %v792 = vld [vmem:[%s3 + $0x17c] sm:$0xf]
    %v793 = vld [vmem:[%s3 + $0x180] sm:$0xf]
    %v794 = vld [vmem:[%s3 + $0x184] sm:$0xf]
    %v795 = vld [vmem:[%s3 + $0x188] sm:$0xf]
    %v796 = vld [vmem:[%s3 + $0x18c] sm:$0xf]
    %v797 = vld [vmem:[%s3 + $0x190] sm:$0xf]
    %v798 = vld [vmem:[%s3 + $0x194] sm:$0xf]
    %v799 = vld [vmem:[%s3 + $0x198] sm:$0xf]
    %v800 = vld [vmem:[%s3 + $0x19c] sm:$0xf]
    %v801 = vld [vmem:[%s3 + $0x1a0] sm:$0xf]
    %v802 = vld [vmem:[%s3 + $0x1a4] sm:$0xf]
    %v803 = vld [vmem:[%s3 + $0x1a8] sm:$0xf]
    %v804 = vld [vmem:[%s3 + $0x1ac] sm:$0xf]
    %v805 = vld [vmem:[%s3 + $0x1b0] sm:$0xf]
    %v806 = vld [vmem:[%s3 + $0x1b4] sm:$0xf]
    %v807 = vld [vmem:[%s3 + $0x1b8] sm:$0xf]
    %v808 = vld [vmem:[%s3 + $0x1bc] sm:$0xf]
    %v809 = vld [vmem:[%s3 + $0x1c0] sm:$0xf]
    %v810 = vld [vmem:[%s3 + $0x1c4] sm:$0xf]
    %v811 = vld [vmem:[%s3 + $0x1c8] sm:$0xf]
    %v812 = vld [vmem:[%s3 + $0x1cc] sm:$0xf]
    %v813 = vld [vmem:[%s3 + $0x1d0] sm:$0xf]
    %v814 = vld [vmem:[%s3 + $0x1d4] sm:$0xf]
    %v815 = vld [vmem:[%s3 + $0x1d8] sm:$0xf]
    %v816 = vld [vmem:[%s3 + $0x1dc] sm:$0xf]
    %v817 = vld [vmem:[%s3 + $0x1e0] sm:$0xf]
    %v818 = vld [vmem:[%s3 + $0x1e4] sm:$0xf]
    %v819 = vld [vmem:[%s3 + $0x1e8] sm:$0xf]
    %v820 = vld [vmem:[%s3 + $0x1ec] sm:$0xf]
    %v821 = vld [vmem:[%s3 + $0x1f0] sm:$0xf]
    %v822 = vld [vmem:[%s3 + $0x1f4] sm:$0xf]
    %v823 = vld [vmem:[%s3 + $0x1f8] sm:$0xf]
    %v824 = vld [vmem:[%s3 + $0x1fc] sm:$0xf]
    %v825 = vld [vmem:[%s3 + $0x200] sm:$0xf]
    %v826 = vld [vmem:[%s3 + $0x204] sm:$0xf]
    %v827 = vld [vmem:[%s3 + $0x208] sm:$0xf]
    %v828 = vld [vmem:[%s3 + $0x20c] sm:$0xf]
    %v829 = vld [vmem:[%s3 + $0x210] sm:$0xf]
    %v830 = vld [vmem:[%s3 + $0x214] sm:$0xf]
    %v831 = vld [vmem:[%s3 + $0x218] sm:$0xf]
    %v832 = vld [vmem:[%s3 + $0x21c] sm:$0xf]
    %v833 = vld [vmem:[%s3 + $0x220] sm:$0xf]
    %v834 = vld [vmem:[%s3 + $0x224] sm:$0xf]
    %v835 = vld [vmem:[%s3 + $0x228] sm:$0xf]
    %v836 = vld [vmem:[%s3 + $0x22c] sm:$0xf]
    %v837 = vld [vmem:[%s3 + $0x230] sm:$0xf]
    %v838 = vld [vmem:[%s3 + $0x234] sm:$0xf]
    %v839 = vld [vmem:[%s3 + $0x238] sm:$0xf]
    %v840 = vld [vmem:[%s3 + $0x23c] sm:$0xf]
    %v841 = vld [vmem:[%s3 + $0x240] sm:$0xf]
    %v842 = vld [vmem:[%s3 + $0x244] sm:$0xf]
    %v843 = vld [vmem:[%s3 + $0x248] sm:$0xf]
    %v844 = vld [vmem:[%s3 + $0x24c] sm:$0xf]
    %v845 = vld [vmem:[%s3 + $0x250] sm:$0xf]
    %v846 = vld [vmem:[%s3 + $0x254] sm:$0xf]
    %v847 = vld [vmem:[%s3 + $0x258] sm:$0xf]
    %v848 = vld [vmem:[%s3 + $0x25c] sm:$0xf]
    %v849 = vld [vmem:[%s3 + $0x260] sm:$0xf]
    %v850 = vld [vmem:[%s3 + $0x264] sm:$0xf]
    %v851 = vld [vmem:[%s3 + $0x268] sm:$0xf]
    %v852 = vld [vmem:[%s3 + $0x26c] sm:$0xf]
    %v853 = vld [vmem:[%s3 + $0x270] sm:$0xf]
    %v854 = vld [vmem:[%s3 + $0x274] sm:$0xf]
    %v855 = vld [vmem:[%s3 + $0x278] sm:$0xf]
    %v856 = vld [vmem:[%s3 + $0x27c] sm:$0xf]
    %v857 = vld [vmem:[%s3 + $0x280] sm:$0xf]
    %v858 = vld [vmem:[%s3 + $0x284] sm:$0xf]
    %v859 = vld [vmem:[%s3 + $0x288] sm:$0xf]
    %v860 = vld [vmem:[%s3 + $0x28c] sm:$0xf]
    %v861 = vld [vmem:[%s3 + $0x290] sm:$0xf]
    %v862 = vld [vmem:[%s3 + $0x294] sm:$0xf]
    %v863 = vld [vmem:[%s3 + $0x298] sm:$0xf]
    %v864 = vld [vmem:[%s3 + $0x29c] sm:$0xf]
    %v865 = vld [vmem:[%s3 + $0x2a0] sm:$0xf]
    %v866 = vld [vmem:[%s3 + $0x2a4] sm:$0xf]
    %v867 = vld [vmem:[%s3 + $0x2a8] sm:$0xf]
    %v868 = vld [vmem:[%s3 + $0x2ac] sm:$0xf]
    %v869 = vld [vmem:[%s3 + $0x2b0] sm:$0xf]
    %v870 = vld [vmem:[%s3 + $0x2b4] sm:$0xf]
    %v871 = vld [vmem:[%s3 + $0x2b8] sm:$0xf]
    %v872 = vld [vmem:[%s3 + $0x2bc] sm:$0xf]
    %v873 = vld [vmem:[%s3 + $0x2c0] sm:$0xf]
    %v874 = vld [vmem:[%s3 + $0x2c4] sm:$0xf]
    %v875 = vld [vmem:[%s3 + $0x2c8] sm:$0xf]
    %v876 = vld [vmem:[%s3 + $0x2cc] sm:$0xf]
    %v877 = vld [vmem:[%s3 + $0x2d0] sm:$0xf]
    %v878 = vld [vmem:[%s3 + $0x2d4] sm:$0xf]
    %v879 = vld [vmem:[%s3 + $0x2d8] sm:$0xf]
    %v880 = vld [vmem:[%s3 + $0x2dc] sm:$0xf]
    %v881 = vld [vmem:[%s3 + $0x2e0] sm:$0xf]
    %v882 = vld [vmem:[%s3 + $0x2e4] sm:$0xf]
    %v883 = vld [vmem:[%s3 + $0x2e8] sm:$0xf]
    %v884 = vld [vmem:[%s3 + $0x2ec] sm:$0xf]
    %v885 = vld [vmem:[%s3 + $0x2f0] sm:$0xf]
    %v886 = vld [vmem:[%s3 + $0x2f4] sm:$0xf]
    %v887 = vld [vmem:[%s3 + $0x2f8] sm:$0xf]
    %v888 = vld [vmem:[%s3 + $0x2fc] sm:$0xf]
    %v889 = vld [vmem:[%s3 + $0x300] sm:$0xf]
    %v890 = vld [vmem:[%s3 + $0x304] sm:$0xf]
    %v891 = vld [vmem:[%s3 + $0x308] sm:$0xf]
    %v892 = vld [vmem:[%s3 + $0x30c] sm:$0xf]
    %v893 = vld [vmem:[%s3 + $0x310] sm:$0xf]
    %v894 = vld [vmem:[%s3 + $0x314] sm:$0xf]
    %v895 = vld [vmem:[%s3 + $0x318] sm:$0xf]
    %v896 = vld [vmem:[%s3 + $0x31c] sm:$0xf]
    %v897 = vld [vmem:[%s3 + $0x320] sm:$0xf]
    %v898 = vld [vmem:[%s3 + $0x324] sm:$0xf]
    %v899 = vld [vmem:[%s3 + $0x328] sm:$0xf]
    %v900 = vld [vmem:[%s3 + $0x32c] sm:$0xf]
    %v901 = vld [vmem:[%s3 + $0x330] sm:$0xf]
    %v902 = vld [vmem:[%s3 + $0x334] sm:$0xf]
    %v903 = vld [vmem:[%s3 + $0x338] sm:$0xf]
    %v904 = vld [vmem:[%s3 + $0x33c] sm:$0xf]
    %v905 = vld [vmem:[%s3 + $0x340] sm:$0xf]
    %v906 = vld [vmem:[%s3 + $0x344] sm:$0xf]
    %v907 = vld [vmem:[%s3 + $0x348] sm:$0xf]
    %v908 = vld [vmem:[%s3 + $0x34c] sm:$0xf]
    %v909 = vld [vmem:[%s3 + $0x350] sm:$0xf]
    %v910 = vld [vmem:[%s3 + $0x354] sm:$0xf]
    %v911 = vld [vmem:[%s3 + $0x358] sm:$0xf]
    %v912 = vld [vmem:[%s3 + $0x35c] sm:$0xf]
    %v913 = vld [vmem:[%s3 + $0x360] sm:$0xf]
    %v914 = vld [vmem:[%s3 + $0x364] sm:$0xf]
    %v915 = vld [vmem:[%s3 + $0x368] sm:$0xf]
    %v916 = vld [vmem:[%s3 + $0x36c] sm:$0xf]
    %v917 = vld [vmem:[%s3 + $0x370] sm:$0xf]
    %v918 = vld [vmem:[%s3 + $0x374] sm:$0xf]
    %v919 = vld [vmem:[%s3 + $0x378] sm:$0xf]
    %v920 = vld [vmem:[%s3 + $0x37c] sm:$0xf]
    %v921 = vld [vmem:[%s3 + $0x380] sm:$0xf]
    %v922 = vld [vmem:[%s3 + $0x384] sm:$0xf]
    %v923 = vld [vmem:[%s3 + $0x388] sm:$0xf]
    %v924 = vld [vmem:[%s3 + $0x38c] sm:$0xf]
    %v925 = vld [vmem:[%s3 + $0x390] sm:$0xf]
    %v926 = vld [vmem:[%s3 + $0x394] sm:$0xf]
    %v927 = vld [vmem:[%s3 + $0x398] sm:$0xf]
    %v928 = vld [vmem:[%s3 + $0x39c] sm:$0xf]
    %v929 = vld [vmem:[%s3 + $0x3a0] sm:$0xf]
    %v930 = vld [vmem:[%s3 + $0x3a4] sm:$0xf]
    %v931 = vld [vmem:[%s3 + $0x3a8] sm:$0xf]
    %v932 = vld [vmem:[%s3 + $0x3ac] sm:$0xf]
    %v933 = vld [vmem:[%s3 + $0x3b0] sm:$0xf]
    %v934 = vld [vmem:[%s3 + $0x3b4] sm:$0xf]
    %v935 = vld [vmem:[%s3 + $0x3b8] sm:$0xf]
    %v936 = vld [vmem:[%s3 + $0x3bc] sm:$0xf]
    %v937 = vld [vmem:[%s3 + $0x3c0] sm:$0xf]
    %v938 = vld [vmem:[%s3 + $0x3c4] sm:$0xf]
    %v939 = vld [vmem:[%s3 + $0x3c8] sm:$0xf]
    %v940 = vld [vmem:[%s3 + $0x3cc] sm:$0xf]
    %v941 = vld [vmem:[%s3 + $0x3d0] sm:$0xf]
    %v942 = vld [vmem:[%s3 + $0x3d4] sm:$0xf]
    %v943 = vld [vmem:[%s3 + $0x3d8] sm:$0xf]
    %v944 = vld [vmem:[%s3 + $0x3dc] sm:$0xf]
    %v945 = vld [vmem:[%s3 + $0x3e0] sm:$0xf]
    %v946 = vld [vmem:[%s3 + $0x3e4] sm:$0xf]
    %v947 = vld [vmem:[%s3 + $0x3e8] sm:$0xf]
    %v948 = vld [vmem:[%s3 + $0x3ec] sm:$0xf]
    %v949 = vld [vmem:[%s3 + $0x3f0] sm:$0xf]
    %v950 = vld [vmem:[%s3 + $0x3f4] sm:$0xf]
    %v951 = vld [vmem:[%s3 + $0x3f8] sm:$0xf]
    %v952 = vld [vmem:[%s3 + $0x3fc] sm:$0xf]
    %v953 = vld [vmem:[%s4] sm:$0x1]
    %v955 = vlaneseq
    %v956 = vshrl.u32 %v955, 7
    %v957 = vsub.s32 0, %v956
    %v958 = vrot.slane %v953, %v957
    %v1216 = vunpack.c.l.b16 %v697
    %v1217 = vunpack.c.l.b16 %v698
    %v1218 = vunpack.c.l.b16 %v699
    %v1219 = vunpack.c.l.b16 %v700
    %v1220 = vunpack.c.l.b16 %v701
    %v1221 = vunpack.c.l.b16 %v702
    %v1222 = vunpack.c.l.b16 %v703
    %v1223 = vunpack.c.l.b16 %v704
    %v1224 = vunpack.c.l.b16 %v705
    %v1225 = vunpack.c.l.b16 %v706
    %v1226 = vunpack.c.l.b16 %v707
    %v1227 = vunpack.c.l.b16 %v708
    %v1228 = vunpack.c.l.b16 %v709
    %v1229 = vunpack.c.l.b16 %v710
    %v1230 = vunpack.c.l.b16 %v711
    %v1231 = vunpack.c.l.b16 %v712
    %v1232 = vunpack.c.l.b16 %v713
    %v1233 = vunpack.c.l.b16 %v714
    %v1234 = vunpack.c.l.b16 %v715
    %v1235 = vunpack.c.l.b16 %v716
    %v1236 = vunpack.c.l.b16 %v717
    %v1237 = vunpack.c.l.b16 %v718
    %v1238 = vunpack.c.l.b16 %v719
    %v1239 = vunpack.c.l.b16 %v720
    %v1240 = vunpack.c.l.b16 %v721
    %v1241 = vunpack.c.l.b16 %v722
    %v1242 = vunpack.c.l.b16 %v723
    %v1243 = vunpack.c.l.b16 %v724
    %v1244 = vunpack.c.l.b16 %v725
    %v1245 = vunpack.c.l.b16 %v726
    %v1246 = vunpack.c.l.b16 %v727
    %v1247 = vunpack.c.l.b16 %v728
    %v1248 = vunpack.c.l.b16 %v729
    %v1249 = vunpack.c.l.b16 %v730
    %v1250 = vunpack.c.l.b16 %v731
    %v1251 = vunpack.c.l.b16 %v732
    %v1252 = vunpack.c.l.b16 %v733
    %v1253 = vunpack.c.l.b16 %v734
    %v1254 = vunpack.c.l.b16 %v735
    %v1255 = vunpack.c.l.b16 %v736
    %v1256 = vunpack.c.l.b16 %v737
    %v1257 = vunpack.c.l.b16 %v738
    %v1258 = vunpack.c.l.b16 %v739
    %v1259 = vunpack.c.l.b16 %v740
    %v1260 = vunpack.c.l.b16 %v741
    %v1261 = vunpack.c.l.b16 %v742
    %v1262 = vunpack.c.l.b16 %v743
    %v1263 = vunpack.c.l.b16 %v744
    %v1264 = vunpack.c.l.b16 %v745
    %v1265 = vunpack.c.l.b16 %v746
    %v1266 = vunpack.c.l.b16 %v747
    %v1267 = vunpack.c.l.b16 %v748
    %v1268 = vunpack.c.l.b16 %v749
    %v1269 = vunpack.c.l.b16 %v750
    %v1270 = vunpack.c.l.b16 %v751
    %v1271 = vunpack.c.l.b16 %v752
    %v1272 = vunpack.c.l.b16 %v753
    %v1273 = vunpack.c.l.b16 %v754
    %v1274 = vunpack.c.l.b16 %v755
    %v1275 = vunpack.c.l.b16 %v756
    %v1276 = vunpack.c.l.b16 %v757
    %v1277 = vunpack.c.l.b16 %v758
    %v1278 = vunpack.c.l.b16 %v759
    %v1279 = vunpack.c.l.b16 %v760
    %v1280 = vunpack.c.l.b16 %v761
    %v1281 = vunpack.c.l.b16 %v762
    %v1282 = vunpack.c.l.b16 %v763
    %v1283 = vunpack.c.l.b16 %v764
    %v1284 = vunpack.c.l.b16 %v765
    %v1285 = vunpack.c.l.b16 %v766
    %v1286 = vunpack.c.l.b16 %v767
    %v1287 = vunpack.c.l.b16 %v768
    %v1288 = vunpack.c.l.b16 %v769
    %v1289 = vunpack.c.l.b16 %v770
    %v1290 = vunpack.c.l.b16 %v771
    %v1291 = vunpack.c.l.b16 %v772
    %v1292 = vunpack.c.l.b16 %v773
    %v1293 = vunpack.c.l.b16 %v774
    %v1294 = vunpack.c.l.b16 %v775
    %v1295 = vunpack.c.l.b16 %v776
    %v1296 = vunpack.c.l.b16 %v777
    %v1297 = vunpack.c.l.b16 %v778
    %v1298 = vunpack.c.l.b16 %v779
    %v1299 = vunpack.c.l.b16 %v780
    %v1300 = vunpack.c.l.b16 %v781
    %v1301 = vunpack.c.l.b16 %v782
    %v1302 = vunpack.c.l.b16 %v783
    %v1303 = vunpack.c.l.b16 %v784
    %v1304 = vunpack.c.l.b16 %v785
    %v1305 = vunpack.c.l.b16 %v786
    %v1306 = vunpack.c.l.b16 %v787
    %v1307 = vunpack.c.l.b16 %v788
    %v1308 = vunpack.c.l.b16 %v789
    %v1309 = vunpack.c.l.b16 %v790
    %v1310 = vunpack.c.l.b16 %v791
    %v1311 = vunpack.c.l.b16 %v792
    %v1312 = vunpack.c.l.b16 %v793
    %v1313 = vunpack.c.l.b16 %v794
    %v1314 = vunpack.c.l.b16 %v795
    %v1315 = vunpack.c.l.b16 %v796
    %v1316 = vunpack.c.l.b16 %v797
    %v1317 = vunpack.c.l.b16 %v798
    %v1318 = vunpack.c.l.b16 %v799
    %v1319 = vunpack.c.l.b16 %v800
    %v1320 = vunpack.c.l.b16 %v801
    %v1321 = vunpack.c.l.b16 %v802
    %v1322 = vunpack.c.l.b16 %v803
    %v1323 = vunpack.c.l.b16 %v804
    %v1324 = vunpack.c.l.b16 %v805
    %v1325 = vunpack.c.l.b16 %v806
    %v1326 = vunpack.c.l.b16 %v807
    %v1327 = vunpack.c.l.b16 %v808
    %v1328 = vunpack.c.l.b16 %v809
    %v1329 = vunpack.c.l.b16 %v810
    %v1330 = vunpack.c.l.b16 %v811
    %v1331 = vunpack.c.l.b16 %v812
    %v1332 = vunpack.c.l.b16 %v813
    %v1333 = vunpack.c.l.b16 %v814
    %v1334 = vunpack.c.l.b16 %v815
    %v1335 = vunpack.c.l.b16 %v816
    %v1336 = vunpack.c.l.b16 %v817
    %v1337 = vunpack.c.l.b16 %v818
    %v1338 = vunpack.c.l.b16 %v819
    %v1339 = vunpack.c.l.b16 %v820
    %v1340 = vunpack.c.l.b16 %v821
    %v1341 = vunpack.c.l.b16 %v822
    %v1342 = vunpack.c.l.b16 %v823
    %v1343 = vunpack.c.l.b16 %v824
    %v1344 = vunpack.c.l.b16 %v825
    %v1345 = vunpack.c.l.b16 %v826
    %v1346 = vunpack.c.l.b16 %v827
    %v1347 = vunpack.c.l.b16 %v828
    %v1348 = vunpack.c.l.b16 %v829
    %v1349 = vunpack.c.l.b16 %v830
    %v1350 = vunpack.c.l.b16 %v831
    %v1351 = vunpack.c.l.b16 %v832
    %v1352 = vunpack.c.l.b16 %v833
    %v1353 = vunpack.c.l.b16 %v834
    %v1354 = vunpack.c.l.b16 %v835
    %v1355 = vunpack.c.l.b16 %v836
    %v1356 = vunpack.c.l.b16 %v837
    %v1357 = vunpack.c.l.b16 %v838
    %v1358 = vunpack.c.l.b16 %v839
    %v1359 = vunpack.c.l.b16 %v840
    %v1360 = vunpack.c.l.b16 %v841
    %v1361 = vunpack.c.l.b16 %v842
    %v1362 = vunpack.c.l.b16 %v843
    %v1363 = vunpack.c.l.b16 %v844
    %v1364 = vunpack.c.l.b16 %v845
    %v1365 = vunpack.c.l.b16 %v846
    %v1366 = vunpack.c.l.b16 %v847
    %v1367 = vunpack.c.l.b16 %v848
    %v1368 = vunpack.c.l.b16 %v849
    %v1369 = vunpack.c.l.b16 %v850
    %v1370 = vunpack.c.l.b16 %v851
    %v1371 = vunpack.c.l.b16 %v852
    %v1372 = vunpack.c.l.b16 %v853
    %v1373 = vunpack.c.l.b16 %v854
    %v1374 = vunpack.c.l.b16 %v855
    %v1375 = vunpack.c.l.b16 %v856
    %v1376 = vunpack.c.l.b16 %v857
    %v1377 = vunpack.c.l.b16 %v858
    %v1378 = vunpack.c.l.b16 %v859
    %v1379 = vunpack.c.l.b16 %v860
    %v1380 = vunpack.c.l.b16 %v861
    %v1381 = vunpack.c.l.b16 %v862
    %v1382 = vunpack.c.l.b16 %v863
    %v1383 = vunpack.c.l.b16 %v864
    %v1384 = vunpack.c.l.b16 %v865
    %v1385 = vunpack.c.l.b16 %v866
    %v1386 = vunpack.c.l.b16 %v867
    %v1387 = vunpack.c.l.b16 %v868
    %v1388 = vunpack.c.l.b16 %v869
    %v1389 = vunpack.c.l.b16 %v870
    %v1390 = vunpack.c.l.b16 %v871
    %v1391 = vunpack.c.l.b16 %v872
    %v1392 = vunpack.c.l.b16 %v873
    %v1393 = vunpack.c.l.b16 %v874
    %v1394 = vunpack.c.l.b16 %v875
    %v1395 = vunpack.c.l.b16 %v876
    %v1396 = vunpack.c.l.b16 %v877
    %v1397 = vunpack.c.l.b16 %v878
    %v1398 = vunpack.c.l.b16 %v879
    %v1399 = vunpack.c.l.b16 %v880
    %v1400 = vunpack.c.l.b16 %v881
    %v1401 = vunpack.c.l.b16 %v882
    %v1402 = vunpack.c.l.b16 %v883
    %v1403 = vunpack.c.l.b16 %v884
    %v1404 = vunpack.c.l.b16 %v885
    %v1405 = vunpack.c.l.b16 %v886
    %v1406 = vunpack.c.l.b16 %v887
    %v1407 = vunpack.c.l.b16 %v888
    %v1408 = vunpack.c.l.b16 %v889
    %v1409 = vunpack.c.l.b16 %v890
    %v1410 = vunpack.c.l.b16 %v891
    %v1411 = vunpack.c.l.b16 %v892
    %v1412 = vunpack.c.l.b16 %v893
    %v1413 = vunpack.c.l.b16 %v894
    %v1414 = vunpack.c.l.b16 %v895
    %v1415 = vunpack.c.l.b16 %v896
    %v1416 = vunpack.c.l.b16 %v897
    %v1417 = vunpack.c.l.b16 %v898
    %v1418 = vunpack.c.l.b16 %v899
    %v1419 = vunpack.c.l.b16 %v900
    %v1420 = vunpack.c.l.b16 %v901
    %v1421 = vunpack.c.l.b16 %v902
    %v1422 = vunpack.c.l.b16 %v903
    %v1423 = vunpack.c.l.b16 %v904
    %v1424 = vunpack.c.l.b16 %v905
    %v1425 = vunpack.c.l.b16 %v906
    %v1426 = vunpack.c.l.b16 %v907
    %v1427 = vunpack.c.l.b16 %v908
    %v1428 = vunpack.c.l.b16 %v909
    %v1429 = vunpack.c.l.b16 %v910
    %v1430 = vunpack.c.l.b16 %v911
    %v1431 = vunpack.c.l.b16 %v912
    %v1432 = vunpack.c.l.b16 %v913
    %v1433 = vunpack.c.l.b16 %v914
    %v1434 = vunpack.c.l.b16 %v915
    %v1435 = vunpack.c.l.b16 %v916
    %v1436 = vunpack.c.l.b16 %v917
    %v1437 = vunpack.c.l.b16 %v918
    %v1438 = vunpack.c.l.b16 %v919
    %v1439 = vunpack.c.l.b16 %v920
    %v1440 = vunpack.c.l.b16 %v921
    %v1441 = vunpack.c.l.b16 %v922
    %v1442 = vunpack.c.l.b16 %v923
    %v1443 = vunpack.c.l.b16 %v924
    %v1444 = vunpack.c.l.b16 %v925
    %v1445 = vunpack.c.l.b16 %v926
    %v1446 = vunpack.c.l.b16 %v927
    %v1447 = vunpack.c.l.b16 %v928
    %v1448 = vunpack.c.l.b16 %v929
    %v1449 = vunpack.c.l.b16 %v930
    %v1450 = vunpack.c.l.b16 %v931
    %v1451 = vunpack.c.l.b16 %v932
    %v1452 = vunpack.c.l.b16 %v933
    %v1453 = vunpack.c.l.b16 %v934
    %v1454 = vunpack.c.l.b16 %v935
    %v1455 = vunpack.c.l.b16 %v936
    %v1456 = vunpack.c.l.b16 %v937
    %v1457 = vunpack.c.l.b16 %v938
    %v1458 = vunpack.c.l.b16 %v939
    %v1459 = vunpack.c.l.b16 %v940
    %v1460 = vunpack.c.l.b16 %v941
    %v1461 = vunpack.c.l.b16 %v942
    %v1462 = vunpack.c.l.b16 %v943
    %v1463 = vunpack.c.l.b16 %v944
    %v1464 = vunpack.c.l.b16 %v945
    %v1465 = vunpack.c.l.b16 %v946
    %v1466 = vunpack.c.l.b16 %v947
    %v1467 = vunpack.c.l.b16 %v948
    %v1468 = vunpack.c.l.b16 %v949
    %v1469 = vunpack.c.l.b16 %v950
    %v1470 = vunpack.c.l.b16 %v951
    %v1471 = vunpack.c.l.b16 %v952
    %v1472 = vpack.c.b16 %v1217, %v1216
    %v1473 = vpack.c.b16 %v1219, %v1218
    %v1474 = vpack.c.b16 %v1221, %v1220
    %v1475 = vpack.c.b16 %v1223, %v1222
    %v1476 = vpack.c.b16 %v1225, %v1224
    %v1477 = vpack.c.b16 %v1227, %v1226
    %v1478 = vpack.c.b16 %v1229, %v1228
    %v1479 = vpack.c.b16 %v1231, %v1230
    %v1480 = vpack.c.b16 %v1233, %v1232
    %v1481 = vpack.c.b16 %v1235, %v1234
    %v1482 = vpack.c.b16 %v1237, %v1236
    %v1483 = vpack.c.b16 %v1239, %v1238
    %v1484 = vpack.c.b16 %v1241, %v1240
    %v1485 = vpack.c.b16 %v1243, %v1242
    %v1486 = vpack.c.b16 %v1245, %v1244
    %v1487 = vpack.c.b16 %v1247, %v1246
    %v1488 = vpack.c.b16 %v1249, %v1248
    %v1489 = vpack.c.b16 %v1251, %v1250
    %v1490 = vpack.c.b16 %v1253, %v1252
    %v1491 = vpack.c.b16 %v1255, %v1254
    %v1492 = vpack.c.b16 %v1257, %v1256
    %v1493 = vpack.c.b16 %v1259, %v1258
    %v1494 = vpack.c.b16 %v1261, %v1260
    %v1495 = vpack.c.b16 %v1263, %v1262
    %v1496 = vpack.c.b16 %v1265, %v1264
    %v1497 = vpack.c.b16 %v1267, %v1266
    %v1498 = vpack.c.b16 %v1269, %v1268
    %v1499 = vpack.c.b16 %v1271, %v1270
    %v1500 = vpack.c.b16 %v1273, %v1272
    %v1501 = vpack.c.b16 %v1275, %v1274
    %v1502 = vpack.c.b16 %v1277, %v1276
    %v1503 = vpack.c.b16 %v1279, %v1278
    %v1504 = vpack.c.b16 %v1281, %v1280
    %v1505 = vpack.c.b16 %v1283, %v1282
    %v1506 = vpack.c.b16 %v1285, %v1284
    %v1507 = vpack.c.b16 %v1287, %v1286
    %v1508 = vpack.c.b16 %v1289, %v1288
    %v1509 = vpack.c.b16 %v1291, %v1290
    %v1510 = vpack.c.b16 %v1293, %v1292
    %v1511 = vpack.c.b16 %v1295, %v1294
    %v1512 = vpack.c.b16 %v1297, %v1296
    %v1513 = vpack.c.b16 %v1299, %v1298
    %v1514 = vpack.c.b16 %v1301, %v1300
    %v1515 = vpack.c.b16 %v1303, %v1302
    %v1516 = vpack.c.b16 %v1305, %v1304
    %v1517 = vpack.c.b16 %v1307, %v1306
    %v1518 = vpack.c.b16 %v1309, %v1308
    %v1519 = vpack.c.b16 %v1311, %v1310
    %v1520 = vpack.c.b16 %v1313, %v1312
    %v1521 = vpack.c.b16 %v1315, %v1314
    %v1522 = vpack.c.b16 %v1317, %v1316
    %v1523 = vpack.c.b16 %v1319, %v1318
    %v1524 = vpack.c.b16 %v1321, %v1320
    %v1525 = vpack.c.b16 %v1323, %v1322
    %v1526 = vpack.c.b16 %v1325, %v1324
    %v1527 = vpack.c.b16 %v1327, %v1326
    %v1528 = vpack.c.b16 %v1329, %v1328
    %v1529 = vpack.c.b16 %v1331, %v1330
    %v1530 = vpack.c.b16 %v1333, %v1332
    %v1531 = vpack.c.b16 %v1335, %v1334
    %v1532 = vpack.c.b16 %v1337, %v1336
    %v1533 = vpack.c.b16 %v1339, %v1338
    %v1534 = vpack.c.b16 %v1341, %v1340
    %v1535 = vpack.c.b16 %v1343, %v1342
    %v1536 = vpack.c.b16 %v1345, %v1344
    %v1537 = vpack.c.b16 %v1347, %v1346
    %v1538 = vpack.c.b16 %v1349, %v1348
    %v1539 = vpack.c.b16 %v1351, %v1350
    %v1540 = vpack.c.b16 %v1353, %v1352
    %v1541 = vpack.c.b16 %v1355, %v1354
    %v1542 = vpack.c.b16 %v1357, %v1356
    %v1543 = vpack.c.b16 %v1359, %v1358
    %v1544 = vpack.c.b16 %v1361, %v1360
    %v1545 = vpack.c.b16 %v1363, %v1362
    %v1546 = vpack.c.b16 %v1365, %v1364
    %v1547 = vpack.c.b16 %v1367, %v1366
    %v1548 = vpack.c.b16 %v1369, %v1368
    %v1549 = vpack.c.b16 %v1371, %v1370
    %v1550 = vpack.c.b16 %v1373, %v1372
    %v1551 = vpack.c.b16 %v1375, %v1374
    %v1552 = vpack.c.b16 %v1377, %v1376
    %v1553 = vpack.c.b16 %v1379, %v1378
    %v1554 = vpack.c.b16 %v1381, %v1380
    %v1555 = vpack.c.b16 %v1383, %v1382
    %v1556 = vpack.c.b16 %v1385, %v1384
    %v1557 = vpack.c.b16 %v1387, %v1386
    %v1558 = vpack.c.b16 %v1389, %v1388
    %v1559 = vpack.c.b16 %v1391, %v1390
    %v1560 = vpack.c.b16 %v1393, %v1392
    %v1561 = vpack.c.b16 %v1395, %v1394
    %v1562 = vpack.c.b16 %v1397, %v1396
    %v1563 = vpack.c.b16 %v1399, %v1398
    %v1564 = vpack.c.b16 %v1401, %v1400
    %v1565 = vpack.c.b16 %v1403, %v1402
    %v1566 = vpack.c.b16 %v1405, %v1404
    %v1567 = vpack.c.b16 %v1407, %v1406
    %v1568 = vpack.c.b16 %v1409, %v1408
    %v1569 = vpack.c.b16 %v1411, %v1410
    %v1570 = vpack.c.b16 %v1413, %v1412
    %v1571 = vpack.c.b16 %v1415, %v1414
    %v1572 = vpack.c.b16 %v1417, %v1416
    %v1573 = vpack.c.b16 %v1419, %v1418
    %v1574 = vpack.c.b16 %v1421, %v1420
    %v1575 = vpack.c.b16 %v1423, %v1422
    %v1576 = vpack.c.b16 %v1425, %v1424
    %v1577 = vpack.c.b16 %v1427, %v1426
    %v1578 = vpack.c.b16 %v1429, %v1428
    %v1579 = vpack.c.b16 %v1431, %v1430
    %v1580 = vpack.c.b16 %v1433, %v1432
    %v1581 = vpack.c.b16 %v1435, %v1434
    %v1582 = vpack.c.b16 %v1437, %v1436
    %v1583 = vpack.c.b16 %v1439, %v1438
    %v1584 = vpack.c.b16 %v1441, %v1440
    %v1585 = vpack.c.b16 %v1443, %v1442
    %v1586 = vpack.c.b16 %v1445, %v1444
    %v1587 = vpack.c.b16 %v1447, %v1446
    %v1588 = vpack.c.b16 %v1449, %v1448
    %v1589 = vpack.c.b16 %v1451, %v1450
    %v1590 = vpack.c.b16 %v1453, %v1452
    %v1591 = vpack.c.b16 %v1455, %v1454
    %v1592 = vpack.c.b16 %v1457, %v1456
    %v1593 = vpack.c.b16 %v1459, %v1458
    %v1594 = vpack.c.b16 %v1461, %v1460
    %v1595 = vpack.c.b16 %v1463, %v1462
    %v1596 = vpack.c.b16 %v1465, %v1464
    %v1597 = vpack.c.b16 %v1467, %v1466
    %v1598 = vpack.c.b16 %v1469, %v1468
    %v1599 = vpack.c.b16 %v1471, %v1470
    %1728 = vmatprep.subr.bf16.mxu0 0
    %1729 = vmatpush1.bf16.msra.mxu0 %v1479
    %1730 = vmatprep.subr.bf16.mxu0 0
    %1731 = vmatpush1.bf16.msra.mxu0 %v1478
    %1732 = vmatprep.subr.bf16.mxu0 0
    %1733 = vmatpush1.bf16.msra.mxu0 %v1477
    %1734 = vmatprep.subr.bf16.mxu0 0
    %1735 = vmatpush1.bf16.msra.mxu0 %v1476
    %1736 = vmatprep.subr.bf16.mxu0 0
    %1737 = vmatpush1.bf16.msra.mxu0 %v1475
    %1738 = vmatprep.subr.bf16.mxu0 0
    %1739 = vmatpush1.bf16.msra.mxu0 %v1474
    %1740 = vmatprep.subr.bf16.mxu0 0
    %1741 = vmatpush1.bf16.msra.mxu0 %v1473
    %1742 = vmatprep.subr.bf16.mxu0 0
    %1743 = vmatpush1.bf16.msra.mxu0 %v1472
    %1744 = vmatprep.subr.bf16.mxu0 0
    %1745 = vmatpush2.bf16.msra.mxu0 %v1487
    %1746 = vmatprep.subr.bf16.mxu0 0
    %1747 = vmatpush2.bf16.msra.mxu0 %v1486
    %1748 = vmatprep.subr.bf16.mxu0 0
    %1749 = vmatpush2.bf16.msra.mxu0 %v1485
    %1750 = vmatprep.subr.bf16.mxu0 0
    %1751 = vmatpush2.bf16.msra.mxu0 %v1484
    %1752 = vmatprep.subr.bf16.mxu0 0
    %1753 = vmatpush2.bf16.msra.mxu0 %v1483
    %1754 = vmatprep.subr.bf16.mxu0 0
    %1755 = vmatpush2.bf16.msra.mxu0 %v1482
    %1756 = vmatprep.subr.bf16.mxu0 0
    %1757 = vmatpush2.bf16.msra.mxu0 %v1481
    %1758 = vmatprep.subr.bf16.mxu0 0
    %1759 = vmatpush2.bf16.msra.mxu0 %v1480
    %1760 = vmatprep.mubr.bf16.mxu0 %v682
    %1761 = vmatmul.mubr.bf16.gmra.mxu0 %v681
    %v1762 = vpop.f32.mrf.mxu0
    %v1763 = vadd.f32 %v958, %v1762
    %v1764 = vpop.f32.mrf.mxu0
    %v1765 = vpop.f32.mrf.mxu0
    %v1766 = vadd.f32 %v958, %v1765
    %v1767 = vpop.f32.mrf.mxu0
    %1768 = vdwg.mxu0
    %1769 = vmatprep.subr.bf16.mxu0 0
    %1770 = vmatpush1.bf16.msra.mxu0 %v1495
    %1771 = vmatprep.subr.bf16.mxu0 0
    %1772 = vmatpush1.bf16.msra.mxu0 %v1494
    %1773 = vmatprep.subr.bf16.mxu0 0
    %1774 = vmatpush1.bf16.msra.mxu0 %v1493
    %1775 = vmatprep.subr.bf16.mxu0 0
    %1776 = vmatpush1.bf16.msra.mxu0 %v1492
    %1777 = vmatprep.subr.bf16.mxu0 0
    %1778 = vmatpush1.bf16.msra.mxu0 %v1491
    %1779 = vmatprep.subr.bf16.mxu0 0
    %1780 = vmatpush1.bf16.msra.mxu0 %v1490
    %1781 = vmatprep.subr.bf16.mxu0 0
    %1782 = vmatpush1.bf16.msra.mxu0 %v1489
    %1783 = vmatprep.subr.bf16.mxu0 0
    %1784 = vmatpush1.bf16.msra.mxu0 %v1488
    %1785 = vmatprep.subr.bf16.mxu0 0
    %1786 = vmatpush2.bf16.msra.mxu0 %v1503
    %1787 = vmatprep.subr.bf16.mxu0 0
    %1788 = vmatpush2.bf16.msra.mxu0 %v1502
    %1789 = vmatprep.subr.bf16.mxu0 0
    %1790 = vmatpush2.bf16.msra.mxu0 %v1501
    %1791 = vmatprep.subr.bf16.mxu0 0
    %1792 = vmatpush2.bf16.msra.mxu0 %v1500
    %1793 = vmatprep.subr.bf16.mxu0 0
    %1794 = vmatpush2.bf16.msra.mxu0 %v1499
    %1795 = vmatprep.subr.bf16.mxu0 0
    %1796 = vmatpush2.bf16.msra.mxu0 %v1498
    %1797 = vmatprep.subr.bf16.mxu0 0
    %1798 = vmatpush2.bf16.msra.mxu0 %v1497
    %1799 = vmatprep.subr.bf16.mxu0 0
    %1800 = vmatpush2.bf16.msra.mxu0 %v1496
    %1801 = vmatprep.mubr.bf16.mxu0 %v684
    %1802 = vmatmul.mubr.bf16.gmra.mxu0 %v683
    %v1803 = vpop.f32.mrf.mxu0
    %v1804 = vadd.f32 %v1763, %v1803
    %v1805 = vpop.f32.mrf.mxu0
    %v1806 = vpop.f32.mrf.mxu0
    %v1807 = vadd.f32 %v1766, %v1806
    %v1808 = vpop.f32.mrf.mxu0
    %1809 = vdwg.mxu0
    %1810 = vmatprep.subr.bf16.mxu0 0
    %1811 = vmatpush1.bf16.msra.mxu0 %v1511
    %1812 = vmatprep.subr.bf16.mxu0 0
    %1813 = vmatpush1.bf16.msra.mxu0 %v1510
    %1814 = vmatprep.subr.bf16.mxu0 0
    %1815 = vmatpush1.bf16.msra.mxu0 %v1509
    %1816 = vmatprep.subr.bf16.mxu0 0
    %1817 = vmatpush1.bf16.msra.mxu0 %v1508
    %1818 = vmatprep.subr.bf16.mxu0 0
    %1819 = vmatpush1.bf16.msra.mxu0 %v1507
    %1820 = vmatprep.subr.bf16.mxu0 0
    %1821 = vmatpush1.bf16.msra.mxu0 %v1506
    %1822 = vmatprep.subr.bf16.mxu0 0
    %1823 = vmatpush1.bf16.msra.mxu0 %v1505
    %1824 = vmatprep.subr.bf16.mxu0 0
    %1825 = vmatpush1.bf16.msra.mxu0 %v1504
    %1826 = vmatprep.subr.bf16.mxu0 0
    %1827 = vmatpush2.bf16.msra.mxu0 %v1519
    %1828 = vmatprep.subr.bf16.mxu0 0
    %1829 = vmatpush2.bf16.msra.mxu0 %v1518
    %1830 = vmatprep.subr.bf16.mxu0 0
    %1831 = vmatpush2.bf16.msra.mxu0 %v1517
    %1832 = vmatprep.subr.bf16.mxu0 0
    %1833 = vmatpush2.bf16.msra.mxu0 %v1516
    %1834 = vmatprep.subr.bf16.mxu0 0
    %1835 = vmatpush2.bf16.msra.mxu0 %v1515
    %1836 = vmatprep.subr.bf16.mxu0 0
    %1837 = vmatpush2.bf16.msra.mxu0 %v1514
    %1838 = vmatprep.subr.bf16.mxu0 0
    %1839 = vmatpush2.bf16.msra.mxu0 %v1513
    %1840 = vmatprep.subr.bf16.mxu0 0
    %1841 = vmatpush2.bf16.msra.mxu0 %v1512
    %1842 = vmatprep.mubr.bf16.mxu0 %v686
    %1843 = vmatmul.mubr.bf16.gmra.mxu0 %v685
    %v1844 = vpop.f32.mrf.mxu0
    %v1845 = vadd.f32 %v1804, %v1844
    %v1846 = vpop.f32.mrf.mxu0
    %v1847 = vpop.f32.mrf.mxu0
    %v1848 = vadd.f32 %v1807, %v1847
    %v1849 = vpop.f32.mrf.mxu0
    %1850 = vdwg.mxu0
    %1851 = vmatprep.subr.bf16.mxu0 0
    %1852 = vmatpush1.bf16.msra.mxu0 %v1527
    %1853 = vmatprep.subr.bf16.mxu0 0
    %1854 = vmatpush1.bf16.msra.mxu0 %v1526
    %1855 = vmatprep.subr.bf16.mxu0 0
    %1856 = vmatpush1.bf16.msra.mxu0 %v1525
    %1857 = vmatprep.subr.bf16.mxu0 0
    %1858 = vmatpush1.bf16.msra.mxu0 %v1524
    %1859 = vmatprep.subr.bf16.mxu0 0
    %1860 = vmatpush1.bf16.msra.mxu0 %v1523
    %1861 = vmatprep.subr.bf16.mxu0 0
    %1862 = vmatpush1.bf16.msra.mxu0 %v1522
    %1863 = vmatprep.subr.bf16.mxu0 0
    %1864 = vmatpush1.bf16.msra.mxu0 %v1521
    %1865 = vmatprep.subr.bf16.mxu0 0
    %1866 = vmatpush1.bf16.msra.mxu0 %v1520
    %1867 = vmatprep.subr.bf16.mxu0 0
    %1868 = vmatpush2.bf16.msra.mxu0 %v1535
    %1869 = vmatprep.subr.bf16.mxu0 0
    %1870 = vmatpush2.bf16.msra.mxu0 %v1534
    %1871 = vmatprep.subr.bf16.mxu0 0
    %1872 = vmatpush2.bf16.msra.mxu0 %v1533
    %1873 = vmatprep.subr.bf16.mxu0 0
    %1874 = vmatpush2.bf16.msra.mxu0 %v1532
    %1875 = vmatprep.subr.bf16.mxu0 0
    %1876 = vmatpush2.bf16.msra.mxu0 %v1531
    %1877 = vmatprep.subr.bf16.mxu0 0
    %1878 = vmatpush2.bf16.msra.mxu0 %v1530
    %1879 = vmatprep.subr.bf16.mxu0 0
    %1880 = vmatpush2.bf16.msra.mxu0 %v1529
    %1881 = vmatprep.subr.bf16.mxu0 0
    %1882 = vmatpush2.bf16.msra.mxu0 %v1528
    %1883 = vmatprep.mubr.bf16.mxu0 %v688
    %1884 = vmatmul.mubr.bf16.gmra.mxu0 %v687
    %v1885 = vpop.f32.mrf.mxu0
    %v1886 = vadd.f32 %v1845, %v1885
    %v1887 = vpop.f32.mrf.mxu0
    %v1888 = vpop.f32.mrf.mxu0
    %v1889 = vadd.f32 %v1848, %v1888
    %v1890 = vpop.f32.mrf.mxu0
    %1891 = vdwg.mxu0
    %1892 = vmatprep.subr.bf16.mxu0 0
    %1893 = vmatpush1.bf16.msra.mxu0 %v1543
    %1894 = vmatprep.subr.bf16.mxu0 0
    %1895 = vmatpush1.bf16.msra.mxu0 %v1542
    %1896 = vmatprep.subr.bf16.mxu0 0
    %1897 = vmatpush1.bf16.msra.mxu0 %v1541
    %1898 = vmatprep.subr.bf16.mxu0 0
    %1899 = vmatpush1.bf16.msra.mxu0 %v1540
    %1900 = vmatprep.subr.bf16.mxu0 0
    %1901 = vmatpush1.bf16.msra.mxu0 %v1539
    %1902 = vmatprep.subr.bf16.mxu0 0
    %1903 = vmatpush1.bf16.msra.mxu0 %v1538
    %1904 = vmatprep.subr.bf16.mxu0 0
    %1905 = vmatpush1.bf16.msra.mxu0 %v1537
    %1906 = vmatprep.subr.bf16.mxu0 0
    %1907 = vmatpush1.bf16.msra.mxu0 %v1536
    %1908 = vmatprep.subr.bf16.mxu0 0
    %1909 = vmatpush2.bf16.msra.mxu0 %v1551
    %1910 = vmatprep.subr.bf16.mxu0 0
    %1911 = vmatpush2.bf16.msra.mxu0 %v1550
    %1912 = vmatprep.subr.bf16.mxu0 0
    %1913 = vmatpush2.bf16.msra.mxu0 %v1549
    %1914 = vmatprep.subr.bf16.mxu0 0
    %1915 = vmatpush2.bf16.msra.mxu0 %v1548
    %1916 = vmatprep.subr.bf16.mxu0 0
    %1917 = vmatpush2.bf16.msra.mxu0 %v1547
    %1918 = vmatprep.subr.bf16.mxu0 0
    %1919 = vmatpush2.bf16.msra.mxu0 %v1546
    %1920 = vmatprep.subr.bf16.mxu0 0
    %1921 = vmatpush2.bf16.msra.mxu0 %v1545
    %1922 = vmatprep.subr.bf16.mxu0 0
    %1923 = vmatpush2.bf16.msra.mxu0 %v1544
    %1924 = vmatprep.mubr.bf16.mxu0 %v690
    %1925 = vmatmul.mubr.bf16.gmra.mxu0 %v689
    %v1926 = vpop.f32.mrf.mxu0
    %v1927 = vadd.f32 %v1886, %v1926
    %v1928 = vpop.f32.mrf.mxu0
    %v1929 = vpop.f32.mrf.mxu0
    %v1930 = vadd.f32 %v1889, %v1929
    %v1931 = vpop.f32.mrf.mxu0
    %1932 = vdwg.mxu0
    %1933 = vmatprep.subr.bf16.mxu0 0
    %1934 = vmatpush1.bf16.msra.mxu0 %v1559
    %1935 = vmatprep.subr.bf16.mxu0 0
    %1936 = vmatpush1.bf16.msra.mxu0 %v1558
    %1937 = vmatprep.subr.bf16.mxu0 0
    %1938 = vmatpush1.bf16.msra.mxu0 %v1557
    %1939 = vmatprep.subr.bf16.mxu0 0
    %1940 = vmatpush1.bf16.msra.mxu0 %v1556
    %1941 = vmatprep.subr.bf16.mxu0 0
    %1942 = vmatpush1.bf16.msra.mxu0 %v1555
    %1943 = vmatprep.subr.bf16.mxu0 0
    %1944 = vmatpush1.bf16.msra.mxu0 %v1554
    %1945 = vmatprep.subr.bf16.mxu0 0
    %1946 = vmatpush1.bf16.msra.mxu0 %v1553
    %1947 = vmatprep.subr.bf16.mxu0 0
    %1948 = vmatpush1.bf16.msra.mxu0 %v1552
    %1949 = vmatprep.subr.bf16.mxu0 0
    %1950 = vmatpush2.bf16.msra.mxu0 %v1567
    %1951 = vmatprep.subr.bf16.mxu0 0
    %1952 = vmatpush2.bf16.msra.mxu0 %v1566
    %1953 = vmatprep.subr.bf16.mxu0 0
    %1954 = vmatpush2.bf16.msra.mxu0 %v1565
    %1955 = vmatprep.subr.bf16.mxu0 0
    %1956 = vmatpush2.bf16.msra.mxu0 %v1564
    %1957 = vmatprep.subr.bf16.mxu0 0
    %1958 = vmatpush2.bf16.msra.mxu0 %v1563
    %1959 = vmatprep.subr.bf16.mxu0 0
    %1960 = vmatpush2.bf16.msra.mxu0 %v1562
    %1961 = vmatprep.subr.bf16.mxu0 0
    %1962 = vmatpush2.bf16.msra.mxu0 %v1561
    %1963 = vmatprep.subr.bf16.mxu0 0
    %1964 = vmatpush2.bf16.msra.mxu0 %v1560
    %1965 = vmatprep.mubr.bf16.mxu0 %v692
    %1966 = vmatmul.mubr.bf16.gmra.mxu0 %v691
    %v1967 = vpop.f32.mrf.mxu0
    %v1968 = vadd.f32 %v1927, %v1967
    %v1969 = vpop.f32.mrf.mxu0
    %v1970 = vpop.f32.mrf.mxu0
    %v1971 = vadd.f32 %v1930, %v1970
    %v1972 = vpop.f32.mrf.mxu0
    %1973 = vdwg.mxu0
    %1974 = vmatprep.subr.bf16.mxu0 0
    %1975 = vmatpush1.bf16.msra.mxu0 %v1575
    %1976 = vmatprep.subr.bf16.mxu0 0
    %1977 = vmatpush1.bf16.msra.mxu0 %v1574
    %1978 = vmatprep.subr.bf16.mxu0 0
    %1979 = vmatpush1.bf16.msra.mxu0 %v1573
    %1980 = vmatprep.subr.bf16.mxu0 0
    %1981 = vmatpush1.bf16.msra.mxu0 %v1572
    %1982 = vmatprep.subr.bf16.mxu0 0
    %1983 = vmatpush1.bf16.msra.mxu0 %v1571
    %1984 = vmatprep.subr.bf16.mxu0 0
    %1985 = vmatpush1.bf16.msra.mxu0 %v1570
    %1986 = vmatprep.subr.bf16.mxu0 0
    %1987 = vmatpush1.bf16.msra.mxu0 %v1569
    %1988 = vmatprep.subr.bf16.mxu0 0
    %1989 = vmatpush1.bf16.msra.mxu0 %v1568
    %1990 = vmatprep.subr.bf16.mxu0 0
    %1991 = vmatpush2.bf16.msra.mxu0 %v1583
    %1992 = vmatprep.subr.bf16.mxu0 0
    %1993 = vmatpush2.bf16.msra.mxu0 %v1582
    %1994 = vmatprep.subr.bf16.mxu0 0
    %1995 = vmatpush2.bf16.msra.mxu0 %v1581
    %1996 = vmatprep.subr.bf16.mxu0 0
    %1997 = vmatpush2.bf16.msra.mxu0 %v1580
    %1998 = vmatprep.subr.bf16.mxu0 0
    %1999 = vmatpush2.bf16.msra.mxu0 %v1579
    %2000 = vmatprep.subr.bf16.mxu0 0
    %2001 = vmatpush2.bf16.msra.mxu0 %v1578
    %2002 = vmatprep.subr.bf16.mxu0 0
    %2003 = vmatpush2.bf16.msra.mxu0 %v1577
    %2004 = vmatprep.subr.bf16.mxu0 0
    %2005 = vmatpush2.bf16.msra.mxu0 %v1576
    %2006 = vmatprep.mubr.bf16.mxu0 %v694
    %2007 = vmatmul.mubr.bf16.gmra.mxu0 %v693
    %v2008 = vpop.f32.mrf.mxu0
    %v2009 = vadd.f32 %v1968, %v2008
    %v2010 = vpop.f32.mrf.mxu0
    %v2011 = vpop.f32.mrf.mxu0
    %v2012 = vadd.f32 %v1971, %v2011
    %v2013 = vpop.f32.mrf.mxu0
    %2014 = vdwg.mxu0
    %2015 = vmatprep.subr.bf16.mxu0 0
    %2016 = vmatpush1.bf16.msra.mxu0 %v1591
    %2017 = vmatprep.subr.bf16.mxu0 0
    %2018 = vmatpush1.bf16.msra.mxu0 %v1590
    %2019 = vmatprep.subr.bf16.mxu0 0
    %2020 = vmatpush1.bf16.msra.mxu0 %v1589
    %2021 = vmatprep.subr.bf16.mxu0 0
    %2022 = vmatpush1.bf16.msra.mxu0 %v1588
    %2023 = vmatprep.subr.bf16.mxu0 0
    %2024 = vmatpush1.bf16.msra.mxu0 %v1587
    %2025 = vmatprep.subr.bf16.mxu0 0
    %2026 = vmatpush1.bf16.msra.mxu0 %v1586
    %2027 = vmatprep.subr.bf16.mxu0 0
    %2028 = vmatpush1.bf16.msra.mxu0 %v1585
    %2029 = vmatprep.subr.bf16.mxu0 0
    %2030 = vmatpush1.bf16.msra.mxu0 %v1584
    %2031 = vmatprep.subr.bf16.mxu0 0
    %2032 = vmatpush2.bf16.msra.mxu0 %v1599
    %2033 = vmatprep.subr.bf16.mxu0 0
    %2034 = vmatpush2.bf16.msra.mxu0 %v1598
    %2035 = vmatprep.subr.bf16.mxu0 0
    %2036 = vmatpush2.bf16.msra.mxu0 %v1597
    %2037 = vmatprep.subr.bf16.mxu0 0
    %2038 = vmatpush2.bf16.msra.mxu0 %v1596
    %2039 = vmatprep.subr.bf16.mxu0 0
    %2040 = vmatpush2.bf16.msra.mxu0 %v1595
    %2041 = vmatprep.subr.bf16.mxu0 0
    %2042 = vmatpush2.bf16.msra.mxu0 %v1594
    %2043 = vmatprep.subr.bf16.mxu0 0
    %2044 = vmatpush2.bf16.msra.mxu0 %v1593
    %2045 = vmatprep.subr.bf16.mxu0 0
    %2046 = vmatpush2.bf16.msra.mxu0 %v1592
    %2047 = vmatprep.mubr.bf16.mxu0 %v696
    %2048 = vmatmul.mubr.bf16.gmra.mxu0 %v695
    %v2049 = vpop.f32.mrf.mxu0
    %v2050 = vadd.f32 %v2009, %v2049
    %v2051 = vpop.f32.mrf.mxu0
    %v2052 = vpop.f32.mrf.mxu0
    %v2053 = vadd.f32 %v2012, %v2052
    %v2054 = vpop.f32.mrf.mxu0
    %2055 = vdwg.mxu0
    %2056 = vst.msk [vmem:[#allocation2] sm:$0xff] %vm301, %v2050
    %2057 = vst.msk [vmem:[#allocation2 + $0x8] sm:$0xff] %vm301, %v2053
    // Predicated region
    $region22: #{tpu_custom_call.1} parent=1 // pred_check
      _
    $region23: #{tpu_custom_call.1} parent=1 // pred_check_branch
      %2059 = sbr.rel (0) target = $region25
    $region24: #{tpu_custom_call.1} parent=1 // pred_region
      %s2061 = ssub.s32 256, 256
      %2062 = vsyncadd [#allocation3], %s2061
      %s2063 = sshll.u32 [#allocation2], 4
      %s2064 = int_to_ptr.vmem [resolvable:$true] %s2063
      %2069 = dma.vmem_to_hbm [thread:$0]  %s2064, 256, %s5, [#allocation3], 128, 128, 8
    $region25: #{tpu_custom_call.1} parent=1 // pred_fallthru
      _
    // Predicated region
    $region26: #{tpu_custom_call.1} parent=1 // pred_check
      _
    $region27: #{tpu_custom_call.1} parent=1 // pred_check_branch
      %2071 = sbr.rel (0) target = $region29
    $region28: #{tpu_custom_call.1} parent=1 // pred_region
      %2072 = dma.done [#allocation3], 256
    $region29: #{tpu_custom_call.1} parent=1 // pred_fallthru
      _
    %2073 = vsyncpa [#allocation3], 1

</llo_original>
